<compile_context>
chip_gen: v7x
topology: tpu7x:2x2x1
jax: 0.10.0
libtpu: 0.0.40
codegen_flags: <defaults>
</compile_context>

<pallas_src>
import functools

import jax
import jax.numpy as jnp
from jax.experimental import pallas as pl
from jax.experimental.pallas import tpu as pltpu

# ----------------------------------------------------------------------------
# Pallas kernels: matmul with fused bias + activation (bf16 in, f32 acc)
# ----------------------------------------------------------------------------
MAX_SINGLE_K = 4096   # every RAFT GEMM has K <= 2304 -> single-K path always


def _rup(x, m):
    return (x + m - 1) // m * m


def _epilogue(r, act):
    if act == "relu":
        return jnp.maximum(r, 0.0)
    if act == "sigmoid":
        return jax.nn.sigmoid(r)
    if act == "tanh":
        return jnp.tanh(r)
    return r


def _mm_kernel_single(a_ref, b_ref, bias_ref, o_ref, *, act):
    # Single K step: bf16 operands, f32 MXU accumulation, f32 epilogue.
    r = jnp.dot(a_ref[...], b_ref[...], preferred_element_type=jnp.float32)
    r = r + bias_ref[...]
    o_ref[...] = _epilogue(r, act).astype(o_ref.dtype)


def _mm_kernel_kloop(a_ref, b_ref, bias_ref, o_ref, acc_ref, *, act):
    k = pl.program_id(2)

    @pl.when(k == 0)
    def _():
        acc_ref[...] = jnp.zeros_like(acc_ref)

    acc_ref[...] += jnp.dot(a_ref[...], b_ref[...],
                            preferred_element_type=jnp.float32)

    @pl.when(k == pl.num_programs(2) - 1)
    def _():
        r = acc_ref[...] + bias_ref[...]
        o_ref[...] = _epilogue(r, act).astype(o_ref.dtype)


def matmul_bias_act(a, b, bias=None, act=None, out_dtype=jnp.bfloat16):
    """out = act(a @ b + bias).  a:(M,K), b:(K,N), bias:(N,).

    bf16 MXU operands, f32 accumulation + epilogue, `out_dtype` store.
    M/N ragged edges handled by cdiv grids (no padded HBM copy of A);
    only K is zero-padded so no garbage enters the contraction.
    """
    M, K = a.shape
    _, N = b.shape
    a = a.astype(jnp.bfloat16)
    b = b.astype(jnp.bfloat16)
    if bias is None:
        bias = jnp.zeros((N,), jnp.float32)
    bias2 = bias.astype(jnp.float32).reshape(1, N)

    Kp = _rup(K, 128)
    if Kp != K:
        a = jnp.pad(a, ((0, 0), (0, Kp - K)))
        b = jnp.pad(b, ((0, Kp - K), (0, 0)))

    tm = 512 if M > 4096 else 256
    tm = min(tm, _rup(M, 128))
    tn = min(512, _rup(N, 128))
    grid_m, grid_n = pl.cdiv(M, tm), pl.cdiv(N, tn)

    if Kp <= MAX_SINGLE_K:
        # K collapsed into one MXU contraction: no scratch, no pl.when,
        # purely parallel 2-D grid (shards across TensorCores).
        return pl.pallas_call(
            functools.partial(_mm_kernel_single, act=act),
            out_shape=jax.ShapeDtypeStruct((M, N), out_dtype),
            grid_spec=pltpu.PrefetchScalarGridSpec(
                num_scalar_prefetch=0,
                grid=(grid_m, grid_n),
                in_specs=[
                    pl.BlockSpec((tm, Kp), lambda i, j: (i, 0)),
                    pl.BlockSpec((Kp, tn), lambda i, j: (0, j)),
                    pl.BlockSpec((1, tn), lambda i, j: (0, j)),
                ],
                out_specs=pl.BlockSpec((tm, tn), lambda i, j: (i, j)),
            ),
            compiler_params=pltpu.CompilerParams(
                dimension_semantics=("parallel", "parallel")),
        )(a, b, bias2)

    # Large-K fallback (unused by RAFT shapes): K-loop + f32 VMEM accumulator.
    tk = 2048
    Kp2 = _rup(Kp, tk)
    if Kp2 != Kp:
        a = jnp.pad(a, ((0, 0), (0, Kp2 - Kp)))
        b = jnp.pad(b, ((0, Kp2 - Kp), (0, 0)))
    return pl.pallas_call(
        functools.partial(_mm_kernel_kloop, act=act),
        out_shape=jax.ShapeDtypeStruct((M, N), out_dtype),
        grid_spec=pltpu.PrefetchScalarGridSpec(
            num_scalar_prefetch=0,
            grid=(grid_m, grid_n, Kp2 // tk),
            in_specs=[
                pl.BlockSpec((tm, tk), lambda i, j, k: (i, k)),
                pl.BlockSpec((tk, tn), lambda i, j, k: (k, j)),
                pl.BlockSpec((1, tn), lambda i, j, k: (0, j)),
            ],
            out_specs=pl.BlockSpec((tm, tn), lambda i, j, k: (i, j)),
            scratch_shapes=[pltpu.VMEM((tm, tn), jnp.float32)],
        ),
        compiler_params=pltpu.CompilerParams(
            dimension_semantics=("parallel", "parallel", "arbitrary")),
    )(a, b, bias2)


# ----------------------------------------------------------------------------
# Pallas kernel: batched all-pairs correlation with fused 1/sqrt(D) scale
# ----------------------------------------------------------------------------
def _corr_kernel(f1_ref, f2_ref, o_ref, *, scale):
    c = jnp.dot(f1_ref[0], f2_ref[0], preferred_element_type=jnp.float32)
    o_ref[0] = (c * scale).astype(o_ref.dtype)


def build_corr_volume(fmap1, fmap2):
    """fmap1, fmap2: (B, H, W, D)  ->  (B, HW, HW) bf16, scaled by 1/sqrt(D)."""
    B, H, W, D = fmap1.shape
    HW = H * W
    f1 = fmap1.reshape(B, HW, D).astype(jnp.bfloat16)
    f2 = jnp.transpose(fmap2.reshape(B, HW, D), (0, 2, 1)).astype(jnp.bfloat16)
    Dp = _rup(D, 128)
    if Dp != D:
        f1 = jnp.pad(f1, ((0, 0), (0, 0), (0, Dp - D)))
        f2 = jnp.pad(f2, ((0, 0), (0, Dp - D), (0, 0)))
    scale = 1.0 / float(D) ** 0.5
    tm = min(512 if HW > 2048 else 256, _rup(HW, 128))
    tn = min(512, _rup(HW, 128))
    return pl.pallas_call(
        functools.partial(_corr_kernel, scale=scale),
        out_shape=jax.ShapeDtypeStruct((B, HW, HW), jnp.bfloat16),
        grid_spec=pltpu.PrefetchScalarGridSpec(
            num_scalar_prefetch=0,
            grid=(B, pl.cdiv(HW, tm), pl.cdiv(HW, tn)),
            in_specs=[
                pl.BlockSpec((1, tm, Dp), lambda b, i, j: (b, i, 0)),
                pl.BlockSpec((1, Dp, tn), lambda b, i, j: (b, 0, j)),
            ],
            out_specs=pl.BlockSpec((1, tm, tn), lambda b, i, j: (b, i, j)),
        ),
        compiler_params=pltpu.CompilerParams(
            dimension_semantics=("parallel", "parallel", "parallel")),
    )(f1, f2)


# ----------------------------------------------------------------------------
# Convolution via im2col + Pallas matmul (NHWC, channels lane-dense)
# ----------------------------------------------------------------------------
def conv2d(x, p, stride=(1, 1), padding=(0, 0), act=None,
           out_dtype=jnp.bfloat16):
    """x: (N, H, W, C) NHWC; p['w']: (O, C, kh, kw) torch layout; p['b']: (O,)."""
    w, b = p["w"], p["b"]
    N, H, W, C = x.shape
    O, _, kh, kw = w.shape
    sh, sw = stride
    ph, pw = padding
    Ho = (H + 2 * ph - kh) // sh + 1
    Wo = (W + 2 * pw - kw) // sw + 1

    if kh == 1 and kw == 1 and ph == 0 and pw == 0:
        xs = x if (sh, sw) == (1, 1) else x[:, ::sh, ::sw, :]
        A = xs.reshape(N * Ho * Wo, C)
    else:
        xp = jnp.pad(x, ((0, 0), (ph, ph), (pw, pw), (0, 0))) if (ph or pw) else x
        cols = [xp[:, i:i + sh * (Ho - 1) + 1:sh, j:j + sw * (Wo - 1) + 1:sw, :]
                for i in range(kh) for j in range(kw)]
        A = jnp.stack(cols, axis=3).reshape(N * Ho * Wo, kh * kw * C)

    Wmat = jnp.transpose(w, (2, 3, 1, 0)).reshape(kh * kw * C, O)  # tap-major, C-minor
    out = matmul_bias_act(A, Wmat, b, act=act, out_dtype=out_dtype)
    return out.reshape(N, Ho, Wo, O)


def conv2d_fused(x, plist, stride=(1, 1), padding=(0, 0), act=None,
                 out_dtype=jnp.bfloat16):
    """Several convs with identical input / geometry / activation -> one GEMM.

    Concatenates weights along the output-channel axis so the im2col matrix
    and A-tile HBM traffic are shared; returns per-branch outputs.
    """
    o_sizes = [p["w"].shape[0] for p in plist]
    w_cat = jnp.concatenate([p["w"] for p in plist], axis=0)
    b_cat = jnp.concatenate([p["b"] for p in plist], axis=0)
    out = conv2d(x, {"w": w_cat, "b": b_cat}, stride=stride, padding=padding,
                 act=act, out_dtype=out_dtype)
    outs, s = [], 0
    for o in o_sizes:
        outs.append(out[..., s:s + o])
        s += o
    return outs


# ----------------------------------------------------------------------------
# Norms (NHWC, f32 statistics)
# ----------------------------------------------------------------------------
def instance_norm(x, eps=1e-5):
    xf = x.astype(jnp.float32)
    m = xf.mean(axis=(1, 2), keepdims=True)
    v = jnp.mean((xf - m) ** 2, axis=(1, 2), keepdims=True)
    return ((xf - m) * jax.lax.rsqrt(v + eps)).astype(x.dtype)


def batch_norm(x, g, b, eps=1e-5):
    # train-mode (default nn.Module) batch statistics over (N, H, W)
    xf = x.astype(jnp.float32)
    m = xf.mean(axis=(0, 1, 2), keepdims=True)
    v = jnp.mean((xf - m) ** 2, axis=(0, 1, 2), keepdims=True)
    y = (xf - m) * jax.lax.rsqrt(v + eps)
    y = y * g.reshape(1, 1, 1, -1) + b.reshape(1, 1, 1, -1)
    return y.astype(x.dtype)


def _norm(y, norm_fn, np_):
    if norm_fn == "instance":
        return instance_norm(y)
    return batch_norm(y, np_["g"], np_["b"])


# ----------------------------------------------------------------------------
# Parameter initialization (deterministic, kaiming-style, torch weight layout)
# ----------------------------------------------------------------------------
def conv_init(key, out_c, in_c, kh, kw):
    fan_in = in_c * kh * kw
    w = jax.random.normal(key, (out_c, in_c, kh, kw), jnp.float32) * jnp.sqrt(2.0 / fan_in)
    return {"w": w, "b": jnp.zeros((out_c,), jnp.float32)}


def bn_init(c):
    return {"g": jnp.ones((c,), jnp.float32), "b": jnp.zeros((c,), jnp.float32)}


def res_init(key, in_planes, planes, stride, norm_fn):
    ks = jax.random.split(key, 3)
    p = {"conv1": conv_init(ks[0], planes, in_planes, 3, 3),
         "conv2": conv_init(ks[1], planes, planes, 3, 3)}
    if norm_fn == "batch":
        p["norm1"] = bn_init(planes)
        p["norm2"] = bn_init(planes)
    if stride != 1:
        p["down"] = conv_init(ks[2], planes, in_planes, 1, 1)
        if norm_fn == "batch":
            p["norm3"] = bn_init(planes)
    return p


def encoder_init(key, output_dim, norm_fn):
    ks = jax.random.split(key, 8)
    p = {"conv1": conv_init(ks[0], 64, 3, 7, 7)}
    if norm_fn == "batch":
        p["norm1"] = bn_init(64)
    p["layer1"] = [res_init(ks[1], 64, 64, 1, norm_fn),
                   res_init(ks[2], 64, 64, 1, norm_fn)]
    p["layer2"] = [res_init(ks[3], 64, 96, 2, norm_fn),
                   res_init(ks[4], 96, 96, 1, norm_fn)]
    p["layer3"] = [res_init(ks[5], 96, 128, 2, norm_fn),
                   res_init(ks[6], 128, 128, 1, norm_fn)]
    p["conv2"] = conv_init(ks[7], output_dim, 128, 1, 1)
    return p


def update_block_init(key):
    ks = jax.random.split(key, 15)
    cor_planes = 4 * (2 * 4 + 1) ** 2   # corr_levels * (2r+1)^2 = 324
    enc = {"convc1": conv_init(ks[0], 256, cor_planes, 1, 1),
           "convc2": conv_init(ks[1], 192, 256, 3, 3),
           "convf1": conv_init(ks[2], 128, 2, 7, 7),
           "convf2": conv_init(ks[3], 64, 128, 3, 3),
           "conv":   conv_init(ks[4], 126, 64 + 192, 3, 3)}
    gru = {"convz1": conv_init(ks[5], 128, 384, 1, 5),
           "convr1": conv_init(ks[6], 128, 384, 1, 5),
           "convq1": conv_init(ks[7], 128, 384, 1, 5),
           "convz2": conv_init(ks[8], 128, 384, 5, 1),
           "convr2": conv_init(ks[9], 128, 384, 5, 1),
           "convq2": conv_init(ks[10], 128, 384, 5, 1)}
    fh = {"conv1": conv_init(ks[11], 256, 128, 3, 3),
          "conv2": conv_init(ks[12], 2, 256, 3, 3)}
    mask = {"conv1": conv_init(ks[13], 256, 128, 3, 3),
            "conv2": conv_init(ks[14], 64 * 9, 256, 1, 1)}
    return {"encoder": enc, "gru": gru, "flow_head": fh, "mask": mask}


def raft_init(key):
    k1, k2, k3 = jax.random.split(key, 3)
    return {"fnet": encoder_init(k1, 256, "instance"),
            "cnet": encoder_init(k2, 128 + 128, "batch"),
            "update": update_block_init(k3)}


# ----------------------------------------------------------------------------
# Encoders (NHWC, bf16 activations)
# ----------------------------------------------------------------------------
def residual_block(p, x, norm_fn, stride):
    y = conv2d(x, p["conv1"], stride=(stride, stride), padding=(1, 1))
    y = jax.nn.relu(_norm(y, norm_fn, p.get("norm1")))
    y = conv2d(y, p["conv2"], padding=(1, 1))
    y = jax.nn.relu(_norm(y, norm_fn, p.get("norm2")))
    if stride != 1:
        x = conv2d(x, p["down"], stride=(stride, stride))
        x = _norm(x, norm_fn, p.get("norm3"))
    return jax.nn.relu(x + y)


def basic_encoder(p, x, norm_fn):
    x = conv2d(x, p["conv1"], stride=(2, 2), padding=(3, 3))
    x = jax.nn.relu(_norm(x, norm_fn, p.get("norm1")))
    for lname, strides in (("layer1", (1, 1)), ("layer2", (2, 1)), ("layer3", (2, 1))):
        for blk, s in zip(p[lname], strides):
            x = residual_block(blk, x, norm_fn, s)
    return conv2d(x, p["conv2"])


# ----------------------------------------------------------------------------
# Correlation pyramid + lookup
# ----------------------------------------------------------------------------
def avg_pool2x2(x):
    N, C, H, W = x.shape
    xf = x.astype(jnp.float32)
    return xf.reshape(N, C, H // 2, 2, W // 2, 2).mean(axis=(3, 5)).astype(x.dtype)


def build_corr_pyramid(fmap1, fmap2, num_levels=4):
    B, H, W, D = fmap1.shape
    corr = build_corr_volume(fmap1, fmap2)            # (B, HW, HW) bf16, scaled
    corr = corr.reshape(B * H * W, 1, H, W)
    pyr = [corr]
    for _ in range(num_levels - 1):
        corr = avg_pool2x2(corr)
        pyr.append(corr)
    return pyr


def bilinear_sample_zero_pad(img, x, y):
    # TODO(synk): gather-based grid_sample kept in plain JAX (no clean Pallas gather).
    N, C, H, W = img.shape
    out_shape = x.shape[1:]
    xf, yf = x.reshape(N, -1), y.reshape(N, -1)
    x0, y0 = jnp.floor(xf), jnp.floor(yf)
    x1, y1 = x0 + 1.0, y0 + 1.0
    wx1, wy1 = xf - x0, yf - y0
    wx0, wy0 = 1.0 - wx1, 1.0 - wy1
    flat = img.reshape(N, C, H * W)

    def tap(ix, iy, w):
        valid = (ix >= 0) & (ix <= W - 1) & (iy >= 0) & (iy <= H - 1)
        ii = (jnp.clip(iy, 0, H - 1) * W + jnp.clip(ix, 0, W - 1)).astype(jnp.int32)
        g = jnp.take_along_axis(
            flat, jnp.broadcast_to(ii[:, None, :], (N, C, ii.shape[-1])), axis=2)
        return g * (w * valid.astype(jnp.float32))[:, None, :]

    out = (tap(x0, y0, wx0 * wy0) + tap(x1, y0, wx1 * wy0)
           + tap(x0, y1, wx0 * wy1) + tap(x1, y1, wx1 * wy1))
    return out.reshape(N, C, *out_shape)


def corr_lookup(pyramid, coords, r=4, num_levels=4):
    # coords: (B, H, W, 2) f32 (channel-last), channel 0 = x, 1 = y
    B, H, W, _ = coords.shape
    coords_p = coords.reshape(B * H * W, 2)
    dx = jnp.linspace(-r, r, 2 * r + 1)
    dy = jnp.linspace(-r, r, 2 * r + 1)
    # matches torch.meshgrid(dy, dx): delta[a, b] = (dy[a], dx[b]) added to (x, y)
    d0, d1 = jnp.meshgrid(dy, dx, indexing="ij")
    out_pyr = []
    for i in range(num_levels):
        corr = pyramid[i]                                 # (B*H*W, 1, Hl, Wl) bf16
        cl = coords_p / (2.0 ** i)
        xs = cl[:, 0][:, None, None] + d0[None]
        ys = cl[:, 1][:, None, None] + d1[None]
        sampled = bilinear_sample_zero_pad(corr, xs, ys)  # (P, 1, 9, 9) f32
        out_pyr.append(sampled.reshape(B, H, W, -1))
    return jnp.concatenate(out_pyr, axis=-1).astype(jnp.bfloat16)  # (B, H, W, 324)


# ----------------------------------------------------------------------------
# Update block (NHWC; GRU state kept in f32, conv inputs bf16)
# ----------------------------------------------------------------------------
def update_block(p, net, inp, corr, flow):
    e = p["encoder"]
    cor = conv2d(corr, e["convc1"], act="relu")
    cor = conv2d(cor, e["convc2"], padding=(1, 1), act="relu")
    flo = conv2d(flow, e["convf1"], padding=(3, 3), act="relu")
    flo = conv2d(flo, e["convf2"], padding=(1, 1), act="relu")
    out = conv2d(jnp.concatenate([cor, flo], axis=-1), e["conv"],
                 padding=(1, 1), act="relu")
    motion = jnp.concatenate([out, flow.astype(out.dtype)], axis=-1)   # 126 + 2

    x = jnp.concatenate([inp, motion], axis=-1)                        # 256 ch, bf16
    g = p["gru"]

    # horizontal pass (1x5): z & r share input + activation -> fused GEMM
    hx = jnp.concatenate([net.astype(x.dtype), x], axis=-1)            # 384 ch
    z, r = conv2d_fused(hx, [g["convz1"], g["convr1"]], padding=(0, 2),
                        act="sigmoid", out_dtype=jnp.float32)
    q = conv2d(jnp.concatenate([(r * net).astype(x.dtype), x], axis=-1),
               g["convq1"], padding=(0, 2), act="tanh", out_dtype=jnp.float32)
    net = (1.0 - z) * net + z * q
    # vertical pass (5x1)
    hx = jnp.concatenate([net.astype(x.dtype), x], axis=-1)
    z, r = conv2d_fused(hx, [g["convz2"], g["convr2"]], padding=(2, 0),
                        act="sigmoid", out_dtype=jnp.float32)
    q = conv2d(jnp.concatenate([(r * net).astype(x.dtype), x], axis=-1),
               g["convq2"], padding=(2, 0), act="tanh", out_dtype=jnp.float32)
    net = (1.0 - z) * net + z * q

    # flow-head conv1 and mask-head conv1 share input / geometry / relu -> fused
    fh, m = p["flow_head"], p["mask"]
    d, mk = conv2d_fused(net, [fh["conv1"], m["conv1"]], padding=(1, 1), act="relu")
    delta_flow = conv2d(d, fh["conv2"], padding=(1, 1), out_dtype=jnp.float32)
    up_mask = 0.25 * conv2d(mk, m["conv2"], out_dtype=jnp.float32)
    return net, up_mask, delta_flow


def upsample_flow(flow, mask):
    # flow: (B, H, W, 2) f32; mask: (B, H, W, 576) f32  ->  (B, 2, 8H, 8W) NCHW
    B, H, W, _ = flow.shape
    mask = mask.reshape(B, H, W, 9, 8, 8)
    mask = jax.nn.softmax(mask, axis=3)
    fp = jnp.pad(8.0 * flow, ((0, 0), (1, 1), (1, 1), (0, 0)))
    taps = jnp.stack([fp[:, ki:ki + H, kj:kj + W, :]
                      for ki in range(3) for kj in range(3)], axis=3)  # (B,H,W,9,2)
    up = jnp.einsum('bhwkc,bhwkuv->bhwuvc', taps, mask)                # (B,H,W,8,8,2)
    up = jnp.transpose(up, (0, 5, 1, 3, 2, 4))                         # (B,2,H,8,W,8)
    return up.reshape(B, 2, 8 * H, 8 * W)


def coords_grid(batch, ht, wd):
    ys, xs = jnp.meshgrid(jnp.arange(ht, dtype=jnp.float32),
                          jnp.arange(wd, dtype=jnp.float32), indexing="ij")
    coords = jnp.stack([xs, ys], axis=-1)                 # (ht, wd, 2): 0 = x, 1 = y
    return jnp.broadcast_to(coords[None], (batch, ht, wd, 2))


# ----------------------------------------------------------------------------
# RAFT core + Raftnet wrapper
# ----------------------------------------------------------------------------
def raft_forward(params, image1, image2, iters=20, test_mode=True):
    image1 = 2.0 * (image1 / 255.0) - 1.0
    image2 = 2.0 * (image2 / 255.0) - 1.0
    B, _, H, W = image1.shape

    # NCHW -> NHWC once; bf16 activations inside
    im1 = jnp.transpose(image1, (0, 2, 3, 1)).astype(jnp.bfloat16)
    im2 = jnp.transpose(image2, (0, 2, 3, 1)).astype(jnp.bfloat16)

    fmaps = basic_encoder(params["fnet"], jnp.concatenate([im1, im2], 0), "instance")
    fmap1, fmap2 = fmaps[:B], fmaps[B:]
    corr_pyr = build_corr_pyramid(fmap1, fmap2, num_levels=4)

    cnet = basic_encoder(params["cnet"], im1, "batch")
    net = jnp.tanh(cnet[..., :128].astype(jnp.float32))          # f32 GRU state
    inp = jax.nn.relu(cnet[..., 128:])                            # bf16 context

    h8, w8 = H // 8, W // 8
    coords0 = coords_grid(B, h8, w8)
    coords1 = coords_grid(B, h8, w8)

    flow_predictions = []
    flow_up = None
    for _ in range(iters):
        coords1 = jax.lax.stop_gradient(coords1)
        corr = corr_lookup(corr_pyr, coords1, r=4, num_levels=4)
        flow = coords1 - coords0
        net, up_mask, delta_flow = update_block(params["update"], net, inp, corr, flow)
        coords1 = coords1 + delta_flow
        flow_up = upsample_flow(coords1 - coords0, up_mask)
        flow_predictions.append(flow_up)

    if test_mode:
        flow_low = jnp.transpose(coords1 - coords0, (0, 3, 1, 2))
        feat = jnp.transpose(fmap1, (0, 3, 1, 2)).astype(jnp.float32)
        return flow_low, flow_up, feat
    return flow_predictions


def raftnet_forward(params, image1, image2, iters=20, test_mode=True):
    image1 = (image1 + 0.5) * 255.0
    image2 = (image2 + 0.5) * 255.0
    ht, wd = image1.shape[-2:]
    pad_ht = (((ht // 8) + 1) * 8 - ht) % 8
    pad_wd = (((wd // 8) + 1) * 8 - wd) % 8
    pad = [pad_wd // 2, pad_wd - pad_wd // 2, pad_ht // 2, pad_ht - pad_ht // 2]

    def pad_img(x):
        return jnp.pad(x, ((0, 0), (0, 0), (pad[2], pad[3]), (pad[0], pad[1])),
                       mode="edge")

    image1, image2 = pad_img(image1), pad_img(image2)
    if test_mode:
        flow_low, flow_up, feat = raft_forward(params, image1, image2,
                                               iters=iters, test_mode=True)
        hp, wp = flow_up.shape[-2:]
        flow_up = flow_up[..., pad[2]:hp - pad[3], pad[0]:wp - pad[1]]
        return flow_up, feat
    return raft_forward(params, image1, image2, iters=iters, test_mode=False)


# ----------------------------------------------------------------------------
if __name__ == "__main__":
    key = jax.random.PRNGKey(0)
    k1, k2, kp = jax.random.split(key, 3)
    # small but pyramid-valid: H, W multiples of 64 so the 4-level corr pyramid
    # never degenerates to 1x1.
    B, H, W = 2, 128, 128
    image1 = jax.random.uniform(k1, (B, 3, H, W), jnp.float32, -0.5, 0.5)
    image2 = jax.random.uniform(k2, (B, 3, H, W), jnp.float32, -0.5, 0.5)
    params = raft_init(kp)

    flow_up, feat = raftnet_forward(params, image1, image2, iters=2, test_mode=True)
    flow_up, feat = jax.block_until_ready((flow_up, feat))

    assert flow_up.shape == (B, 2, H, W)
    assert feat.shape == (B, 256, H // 8, W // 8)
    assert bool(jnp.isfinite(flow_up).all()) and bool(jnp.isfinite(feat).all())
    print("KERNEL_OK")
</pallas_src>

<mosaic_0001>
module attributes {stable_mosaic.version = 11 : i64} {
  func.func @_mm_kernel_single(%arg0: i32, %arg1: i32, %arg2: memref<512x256xbf16, #tpu.memory_space<vmem>>, %arg3: memref<256x128xbf16, #tpu.memory_space<vmem>>, %arg4: memref<1x128xf32, #tpu.memory_space<vmem>>, %arg5: memref<512x128xbf16, #tpu.memory_space<vmem>>) attributes {dimension_semantics = [#tpu.dimension_semantics<parallel>, #tpu.dimension_semantics<parallel>], iteration_bounds = array<i64: 32, 1>, scalar_prefetch = 0 : i64, scratch_operands = 0 : i64, tpu.core_type = #tpu.core_type<tc>, window_params = [{transform_indices = @transform_0, window_bounds = array<i64: 512, 256>}, {transform_indices = @transform_1, window_bounds = array<i64: 256, 128>}, {transform_indices = @transform_2, window_bounds = array<i64: 1, 128>}, {transform_indices = @transform_3, window_bounds = array<i64: 512, 128>}]} {
    %c0 = arith.constant 0 : index
    %c0_0 = arith.constant 0 : index
    %0 = vector.load %arg2[%c0, %c0_0] : memref<512x256xbf16, #tpu.memory_space<vmem>>, vector<512x256xbf16>
    %c0_1 = arith.constant 0 : index
    %c0_2 = arith.constant 0 : index
    %1 = vector.load %arg3[%c0_1, %c0_2] : memref<256x128xbf16, #tpu.memory_space<vmem>>, vector<256x128xbf16>
    %cst = arith.constant dense<0.000000e+00> : vector<512x128xf32>
    %2 = tpu.matmul %0, %1, %cst {dimension_numbers = #tpu.dot_dimension_numbers<[1], [0], [0], [1], [0, 0, 1, 1], [], []>} : vector<512x256xbf16>, vector<256x128xbf16>, vector<512x128xf32> -> vector<512x128xf32>
    %c0_3 = arith.constant 0 : index
    %c0_4 = arith.constant 0 : index
    %3 = vector.load %arg4[%c0_3, %c0_4] : memref<1x128xf32, #tpu.memory_space<vmem>>, vector<1x128xf32>
    %4 = vector.broadcast %3 : vector<1x128xf32> to vector<512x128xf32>
    %5 = arith.addf %2, %4 : vector<512x128xf32>
    %6 = arith.truncf %5 : vector<512x128xf32> to vector<512x128xbf16>
    %c0_5 = arith.constant 0 : index
    %c0_6 = arith.constant 0 : index
    %7 = vector.load %arg5[%c0_5, %c0_6] : memref<512x128xbf16, #tpu.memory_space<vmem>>, vector<512x128xbf16>
    tpu.vector_store %arg5[%c0_5, %c0_6], %6 {strides = array<i32>} : memref<512x128xbf16, #tpu.memory_space<vmem>>, vector<512x128xbf16>,
    return
  }
  func.func @transform_0(%arg0: i32, %arg1: i32) -> (i32, i32) {
    %c0_i32 = arith.constant 0 : i32
    %c0_i32_0 = arith.constant 0 : i32
    return %arg0, %c0_i32 : i32, i32
  }
  func.func @transform_1(%arg0: i32, %arg1: i32) -> (i32, i32) {
    %c0_i32 = arith.constant 0 : i32
    %c0_i32_0 = arith.constant 0 : i32
    return %c0_i32, %arg1 : i32, i32
  }
  func.func @transform_2(%arg0: i32, %arg1: i32) -> (i32, i32) {
    %c0_i32 = arith.constant 0 : i32
    %c0_i32_0 = arith.constant 0 : i32
    return %c0_i32, %arg1 : i32, i32
  }
  func.func @transform_3(%arg0: i32, %arg1: i32) -> (i32, i32) {
    %c0_i32 = arith.constant 0 : i32
    return %arg0, %arg1 : i32, i32
  }
}

</mosaic_0001>

<llo_original>
// kernel: tpu_custom_call.1
$region0: #{tpu_custom_call.1}
  #allocation0 [shape = 'u32[]', space=smem, size = 0x4, offset = 0x4, fixed_abs, tag = 'smem constant byte address 0x4 - core index']
  #allocation1 [shape = 'u32[144,128]{1,0:T(1,128)}', space=vmem, size = 0x12000, scoped, tag = 'internal scratch']
  %s0 = inlined_call_operand.hbm [shape: bf16[16384,256], index: 0, kind: input, shape index: {}]
  %s1 = inlined_call_operand.vmem [shape: bf16[256,64], index: 1, kind: input, shape index: {}]
  %s2 = inlined_call_operand.hbm [shape: f32[1,64], index: 2, kind: input, shape index: {}]
  %s3 = inlined_call_operand.vmem [shape: bf16[16384,64], index: 3, kind: output, shape index: {}]
  %s4 = sld [smem:[#allocation0]]
  $region53: #{tpu_custom_call.1} parent=0
    _
  %s6 = ssub.s32 1, %s4
  %s7 = scalar_select 0, %s6, %s4
  $region1: #{tpu_custom_call.1} parent=0
    #allocation2 [shape = 'u8[524288]{0}', space=vmem, size = 0x80000, scoped, tag = 'input window, operand 0']
    #allocation3 [shape = 's32[2]{0}', space=sflag, size = 0x8, scoped, tag = 'scoped memory for tpu_custom_call.1']
    #allocation4 [shape = 'u8[512]{0}', space=vmem, size = 0x400, scoped, tag = 'input window, operand 2, single buffered']
    #allocation5 [shape = 's32[1]{0}', space=sflag, size = 0x4, scoped, tag = 'scoped memory for tpu_custom_call.1']
    %8 = vsyncpa [#allocation3], 0
    %s9 = scalar_lea.sflag [#allocation3], 1
    %10 = vsyncpa %s9, 0
    %11 = vsyncpa [#allocation5], 0
    loop: start=0, step=1, limit=34
    $region2: #{tpu_custom_call.1} parent=1 // loop_pre_header
      _
    $region3: #{tpu_custom_call.1} parent=1 // loop_header
      %s13 = sphi 0, %s17
      %p14 = scmp.ge.s32.totalorder %s13, 34
      %s20 = sphi 0, %s32
      %s21 = sphi 0, %s28
      %s22 = sphi 0, %s20
      %s23 = sphi 0, %s21
      %s24 = sphi 0, %s22
      %s25 = sphi 0, %s23
      %s35 = sphi 0, %s37
      %s38 = sphi 0, %s35
      %s39 = sphi 0, %s38
      %s55 = sphi 0, %s39
      %s61 = sphi 0, %s63
      %s64 = sphi 0, %s61
      %s65 = sphi 0, %s64
      %s81 = sphi 0, %s65
      %s87 = sphi 0, %s89
      %s90 = sphi 0, %s87
      %s91 = sphi 0, %s90
      %s107 = sphi 0, %s91
      %s115 = sphi 0, %s117
      %s118 = sphi 0, %s115
      %s119 = sphi 0, %s118
      %s135 = sphi 0, %s119
    $region4: #{tpu_custom_call.1} parent=1 // loop_header_branch
      %16 = sbr.rel (%p14) target = $region8
    $region5: #{tpu_custom_call.1} parent=1 // loop_body
      %s18 = ssub.s32 %s13, 1
      %s19 = ssub.s32 %s13, 2
      %s26 = sadd.s32 1, %s21
      %p27 = scmp.ge.s32.totalorder %s26, 1
      %s28 = scalar_select %p27, 0, %s26
      %s29 = sadd.s32 1, %s20
      %s30 = scalar_select %p27, %s29, %s20
      %p31 = scmp.ge.s32.totalorder %s30, 32
      %s32 = scalar_select %p31, 0, %s30
      %s33 = ssub.s32 %s20, %s32
      %p34 = scmp.eq.s32.totalorder %s33, 0
      %s36 = sadd.s32 %s35, 1
      %s37 = scalar_select %p34, %s35, %s36
      %p40 = pneg %p34
      %p41 = scmp.eq.s32.totalorder %s13, 31
      %p42 = por %p40, %p41
      %p43 = scmp.ne.s32.totalorder %s35, %s38
      %p44 = scmp.eq.s32.totalorder %s13, 0
      %p45 = por %p43, %p44
      %p46 = scmp.ne.s32.totalorder %s35, %s38
      %p47 = scmp.eq.s32.totalorder %s18, 31
      %p48 = por %p46, %p47
      %p49 = scmp.ne.s32.totalorder %s38, %s39
      %p50 = scmp.eq.s32.totalorder %s18, 0
      %p51 = por %p49, %p50
      %p52 = scmp.ne.s32.totalorder %s38, %s39
      %p53 = scmp.eq.s32.totalorder %s19, 31
      %p54 = por %p52, %p53
      %p56 = scmp.ne.s32.totalorder %s39, %s55
      %p57 = scmp.eq.s32.totalorder %s19, 0
      %p58 = por %p56, %p57
      %s59 = ssub.s32 %s21, %s28
      %p60 = scmp.eq.s32.totalorder %s59, 0
      %s62 = sadd.s32 %s61, 1
      %s63 = scalar_select %p60, %s61, %s62
      %p66 = pneg %p60
      %p67 = scmp.eq.s32.totalorder %s13, 31
      %p68 = por %p66, %p67
      %p69 = scmp.ne.s32.totalorder %s61, %s64
      %p70 = scmp.eq.s32.totalorder %s13, 0
      %p71 = por %p69, %p70
      %p72 = scmp.ne.s32.totalorder %s61, %s64
      %p73 = scmp.eq.s32.totalorder %s18, 31
      %p74 = por %p72, %p73
      %p75 = scmp.ne.s32.totalorder %s64, %s65
      %p76 = scmp.eq.s32.totalorder %s18, 0
      %p77 = por %p75, %p76
      %p78 = scmp.ne.s32.totalorder %s64, %s65
      %p79 = scmp.eq.s32.totalorder %s19, 31
      %p80 = por %p78, %p79
      %p82 = scmp.ne.s32.totalorder %s65, %s81
      %p83 = scmp.eq.s32.totalorder %s19, 0
      %p84 = por %p82, %p83
      %s85 = ssub.s32 %s21, %s28
      %p86 = scmp.eq.s32.totalorder %s85, 0
      %s88 = sadd.s32 %s87, 1
      %s89 = scalar_select %p86, %s87, %s88
      %p92 = pneg %p86
      %p93 = scmp.eq.s32.totalorder %s13, 31
      %p94 = por %p92, %p93
      %p95 = scmp.ne.s32.totalorder %s87, %s90
      %p96 = scmp.eq.s32.totalorder %s13, 0
      %p97 = por %p95, %p96
      %p98 = scmp.ne.s32.totalorder %s87, %s90
      %p99 = scmp.eq.s32.totalorder %s18, 31
      %p100 = por %p98, %p99
      %p101 = scmp.ne.s32.totalorder %s90, %s91
      %p102 = scmp.eq.s32.totalorder %s18, 0
      %p103 = por %p101, %p102
      %p104 = scmp.ne.s32.totalorder %s90, %s91
      %p105 = scmp.eq.s32.totalorder %s19, 31
      %p106 = por %p104, %p105
      %p108 = scmp.ne.s32.totalorder %s91, %s107
      %p109 = scmp.eq.s32.totalorder %s19, 0
      %p110 = por %p108, %p109
      %s111 = ssub.s32 %s20, %s32
      %s112 = ssub.s32 %s21, %s28
      %s113 = sor.u32 %s111, %s112
      %p114 = scmp.eq.s32.totalorder %s113, 0
      %s116 = sadd.s32 %s115, 1
      %s117 = scalar_select %p114, %s115, %s116
      %p120 = pneg %p114
      %p121 = scmp.eq.s32.totalorder %s13, 31
      %p122 = por %p120, %p121
      %p123 = scmp.ne.s32.totalorder %s115, %s118
      %p124 = scmp.eq.s32.totalorder %s13, 0
      %p125 = por %p123, %p124
      %p126 = scmp.ne.s32.totalorder %s115, %s118
      %p127 = scmp.eq.s32.totalorder %s18, 31
      %p128 = por %p126, %p127
      %p129 = scmp.ne.s32.totalorder %s118, %s119
      %p130 = scmp.eq.s32.totalorder %s18, 0
      %p131 = por %p129, %p130
      %p132 = scmp.ne.s32.totalorder %s118, %s119
      %p133 = scmp.eq.s32.totalorder %s19, 31
      %p134 = por %p132, %p133
      %p136 = scmp.ne.s32.totalorder %s119, %s135
      %p137 = scmp.eq.s32.totalorder %s19, 0
      %p138 = por %p136, %p137
      %p139 = scmp.le.s32.totalorder 1, %s13
      %p140 = scmp.lt.s32.totalorder %s13, 33
      %p141 = pnand %p139, %p140
      %p142 = pneg %p141
      // Predicated region
      $region9: #{tpu_custom_call.1} parent=5 // pred_check
        _
      $region10: #{tpu_custom_call.1} parent=5 // pred_check_branch
        %144 = sbr.rel (%p141) target = $region12
      $region11: #{tpu_custom_call.1} parent=5 // pred_region
        %s145 = ssub.s32 %s13, 1
        // Predicated region
        $region13: #{tpu_custom_call.1} parent=11 // pred_check
          %p146 = pneg %p77
        $region14: #{tpu_custom_call.1} parent=11 // pred_check_branch
          %148 = sbr.rel (%p146) target = $region16
        $region15: #{tpu_custom_call.1} parent=11 // pred_region
          %p149 = scmp.lt.s32.totalorder %s23, 0
          %s150 = scalar_select %p149, %s23, 0
          %s151 = smul.addr %s150, 4
          %s152 = scalar_lea.vmem %s1, %s151
        $region16: #{tpu_custom_call.1} parent=11 // pred_fallthru
          _
        // Predicated region
        $region17: #{tpu_custom_call.1} parent=11 // pred_check
          %p153 = pneg %p103
        $region18: #{tpu_custom_call.1} parent=11 // pred_check_branch
          %155 = sbr.rel (%p153) target = $region20
        $region19: #{tpu_custom_call.1} parent=11 // pred_region
          %s157 = ssub.s32 16, 16
          %158 = vsyncadd [#allocation5], %s157
          %s159 = smul.addr %s23, 16
          %s160 = scalar_lea.hbm %s2, %s159
          %s162 = sshll.u32 [#allocation4], 4
          %s163 = int_to_ptr.vmem [resolvable:$true] %s162
          %165 = dma.hbm_to_vmem [thread:$0]  %s160, 16, %s163, [#allocation5]
        $region20: #{tpu_custom_call.1} parent=11 // pred_fallthru
          _
      $region12: #{tpu_custom_call.1} parent=5 // pred_fallthru
        _
      %p166 = scmp.lt.s32.totalorder %s13, 32
      // Predicated region
      $region21: #{tpu_custom_call.1} parent=5 // pred_check
        %p167 = pneg %p166
      $region22: #{tpu_custom_call.1} parent=5 // pred_check_branch
        %169 = sbr.rel (%p167) target = $region24
      $region23: #{tpu_custom_call.1} parent=5 // pred_region
        // Predicated region
        $region25: #{tpu_custom_call.1} parent=23 // pred_check
          %p170 = pneg %p45
        $region26: #{tpu_custom_call.1} parent=23 // pred_check_branch
          %172 = sbr.rel (%p170) target = $region28
        $region27: #{tpu_custom_call.1} parent=23 // pred_region
          %s173 = sand.u32 %s35, 1
          %s174 = scalar_lea.sflag [#allocation3], %s173
          %s175 = sand.u32 %s35, 1
          %s176 = smul.addr %s175, 512
          %s177 = scalar_lea.vmem [#allocation2], %s176
          %s178 = smul.u32 64, %s20
          %s180 = ssub.s32 8192, 8192
          %181 = vsyncadd %s174, %s180
          %s182 = smul.addr %s178, 2
          %s183 = smul.addr %s182, 64
          %s184 = scalar_lea.hbm %s0, %s183
          %s185 = sshll.u32 %s177, 4
          %s186 = int_to_ptr.vmem [resolvable:$true] %s185
          %191 = dma.hbm_to_vmem [thread:$0]  %s184, 8192, %s186, %s174, 128, 128, 8
        $region28: #{tpu_custom_call.1} parent=23 // pred_fallthru
          _
      $region24: #{tpu_custom_call.1} parent=5 // pred_fallthru
        _
      %p192 = scmp.le.s32.totalorder 1, %s13
      %p193 = scmp.lt.s32.totalorder %s13, 33
      %p194 = pnand %p192, %p193
      %p195 = pneg %p194
      // Predicated region
      $region29: #{tpu_custom_call.1} parent=5 // pred_check
        _
      $region30: #{tpu_custom_call.1} parent=5 // pred_check_branch
        %197 = sbr.rel (%p194) target = $region32
      $region31: #{tpu_custom_call.1} parent=5 // pred_region
        %s198 = ssub.s32 %s13, 1
        %s199 = sand.u32 %s38, 1
        %s200 = scalar_lea.sflag [#allocation3], %s199
        %s201 = sand.u32 %s38, 1
        %s202 = smul.addr %s201, 512
        %s203 = scalar_lea.vmem [#allocation2], %s202
        // Predicated region
        $region33: #{tpu_custom_call.1} parent=31 // pred_check
          %p204 = pneg %p51
        $region34: #{tpu_custom_call.1} parent=31 // pred_check_branch
          %206 = sbr.rel (%p204) target = $region36
        $region35: #{tpu_custom_call.1} parent=31 // pred_region
          %207 = dma.done %s200, 8192
        $region36: #{tpu_custom_call.1} parent=31 // pred_fallthru
          _
        // Predicated region
        $region37: #{tpu_custom_call.1} parent=31 // pred_check
          %p208 = pneg %p103
        $region38: #{tpu_custom_call.1} parent=31 // pred_check_branch
          %210 = sbr.rel (%p208) target = $region40
        $region39: #{tpu_custom_call.1} parent=31 // pred_region
          %211 = dma.done [#allocation5], 16
        $region40: #{tpu_custom_call.1} parent=31 // pred_fallthru
          _
        %s212 = sand.u32 %s38, 1
        %s213 = scalar_lea.sflag [#allocation3], %s212
        %s214 = sand.u32 %s38, 1
        %s215 = smul.addr %s214, 512
        %s216 = scalar_lea.vmem [#allocation2], %s215
        %p217 = pneg %p51
        %p218 = pneg %p48
        %p219 = scmp.lt.s32.totalorder %s23, 0
        %s220 = scalar_select %p219, %s23, 0
        %s221 = smul.addr %s220, 4
        %s222 = scalar_lea.vmem %s1, %s221
        %p223 = pneg %p77
        %p224 = pneg %p74
        %p225 = pneg %p103
        %p226 = pneg %p100
        %p227 = pneg %p131
        %p228 = pneg %p128
        %s229 = smul.u32 64, %s22
        %p230 = scmp.lt.s32.totalorder %s229, 2047
        %s231 = scalar_select %p230, %s229, 2047
        %p232 = scmp.lt.s32.totalorder %s23, 0
        %s233 = scalar_select %p232, %s23, 0
        %s234 = sadd.s32 %s233, %s231
        %s235 = smul.addr %s234, 4
        %s236 = scalar_lea.vmem %s3, %s235
        %s237 = smul.u32 64, %s22
        %p238 = scmp.lt.s32.totalorder %s23, 0
        %s239 = scalar_select %p238, %s23, 0
        %s240 = smul.addr %s239, 4
        %s241 = scalar_lea.vmem %s1, %s240
        %s242 = smul.u32 64, %s22
        %p243 = scmp.lt.s32.totalorder %s242, 2047
        %s244 = scalar_select %p243, %s242, 2047
        %p245 = scmp.lt.s32.totalorder %s23, 0
        %s246 = scalar_select %p245, %s23, 0
        %s247 = sadd.s32 %s246, %s244
        %s248 = smul.addr %s247, 4
        %s249 = scalar_lea.vmem %s3, %s248
        %s250 = smul.u32 64, %s22
        %v252 = vld [vmem:[%s203] sm:$0xff]
        %v253 = vld [vmem:[%s203 + $0x8] sm:$0xff]
        %v254 = vld [vmem:[%s203 + $0x10] sm:$0xff]
        %v255 = vld [vmem:[%s203 + $0x18] sm:$0xff]
        %v256 = vld [vmem:[%s203 + $0x20] sm:$0xff]
        %v257 = vld [vmem:[%s203 + $0x28] sm:$0xff]
        %v258 = vld [vmem:[%s203 + $0x30] sm:$0xff]
        %v259 = vld [vmem:[%s203 + $0x38] sm:$0xff]
        %v260 = vld [vmem:[%s203 + $0x40] sm:$0xff]
        %v261 = vld [vmem:[%s203 + $0x48] sm:$0xff]
        %v262 = vld [vmem:[%s203 + $0x50] sm:$0xff]
        %v263 = vld [vmem:[%s203 + $0x58] sm:$0xff]
        %v264 = vld [vmem:[%s203 + $0x60] sm:$0xff]
        %v265 = vld [vmem:[%s203 + $0x68] sm:$0xff]
        %v266 = vld [vmem:[%s203 + $0x70] sm:$0xff]
        %v267 = vld [vmem:[%s203 + $0x78] sm:$0xff]
        %v268 = vld [vmem:[%s203 + $0x80] sm:$0xff]
        %v269 = vld [vmem:[%s203 + $0x88] sm:$0xff]
        %v270 = vld [vmem:[%s203 + $0x90] sm:$0xff]
        %v271 = vld [vmem:[%s203 + $0x98] sm:$0xff]
        %v272 = vld [vmem:[%s203 + $0xa0] sm:$0xff]
        %v273 = vld [vmem:[%s203 + $0xa8] sm:$0xff]
        %v274 = vld [vmem:[%s203 + $0xb0] sm:$0xff]
        %v275 = vld [vmem:[%s203 + $0xb8] sm:$0xff]
        %v276 = vld [vmem:[%s203 + $0xc0] sm:$0xff]
        %v277 = vld [vmem:[%s203 + $0xc8] sm:$0xff]
        %v278 = vld [vmem:[%s203 + $0xd0] sm:$0xff]
        %v279 = vld [vmem:[%s203 + $0xd8] sm:$0xff]
        %v280 = vld [vmem:[%s203 + $0xe0] sm:$0xff]
        %v281 = vld [vmem:[%s203 + $0xe8] sm:$0xff]
        %v282 = vld [vmem:[%s203 + $0xf0] sm:$0xff]
        %v283 = vld [vmem:[%s203 + $0xf8] sm:$0xff]
        %v284 = vld [vmem:[%s203 + $0x100] sm:$0xff]
        %v285 = vld [vmem:[%s203 + $0x108] sm:$0xff]
        %v286 = vld [vmem:[%s203 + $0x110] sm:$0xff]
        %v287 = vld [vmem:[%s203 + $0x118] sm:$0xff]
        %v288 = vld [vmem:[%s203 + $0x120] sm:$0xff]
        %v289 = vld [vmem:[%s203 + $0x128] sm:$0xff]
        %v290 = vld [vmem:[%s203 + $0x130] sm:$0xff]
        %v291 = vld [vmem:[%s203 + $0x138] sm:$0xff]
        %v292 = vld [vmem:[%s203 + $0x140] sm:$0xff]
        %v293 = vld [vmem:[%s203 + $0x148] sm:$0xff]
        %v294 = vld [vmem:[%s203 + $0x150] sm:$0xff]
        %v295 = vld [vmem:[%s203 + $0x158] sm:$0xff]
        %v296 = vld [vmem:[%s203 + $0x160] sm:$0xff]
        %v297 = vld [vmem:[%s203 + $0x168] sm:$0xff]
        %v298 = vld [vmem:[%s203 + $0x170] sm:$0xff]
        %v299 = vld [vmem:[%s203 + $0x178] sm:$0xff]
        %v300 = vld [vmem:[%s203 + $0x180] sm:$0xff]
        %v301 = vld [vmem:[%s203 + $0x188] sm:$0xff]
        %v302 = vld [vmem:[%s203 + $0x190] sm:$0xff]
        %v303 = vld [vmem:[%s203 + $0x198] sm:$0xff]
        %v304 = vld [vmem:[%s203 + $0x1a0] sm:$0xff]
        %v305 = vld [vmem:[%s203 + $0x1a8] sm:$0xff]
        %v306 = vld [vmem:[%s203 + $0x1b0] sm:$0xff]
        %v307 = vld [vmem:[%s203 + $0x1b8] sm:$0xff]
        %v308 = vld [vmem:[%s203 + $0x1c0] sm:$0xff]
        %v309 = vld [vmem:[%s203 + $0x1c8] sm:$0xff]
        %v310 = vld [vmem:[%s203 + $0x1d0] sm:$0xff]
        %v311 = vld [vmem:[%s203 + $0x1d8] sm:$0xff]
        %v312 = vld [vmem:[%s203 + $0x1e0] sm:$0xff]
        %v313 = vld [vmem:[%s203 + $0x1e8] sm:$0xff]
        %v314 = vld [vmem:[%s203 + $0x1f0] sm:$0xff]
        %v315 = vld [vmem:[%s203 + $0x1f8] sm:$0xff]
        %v316 = vld [vmem:[%s241] sm:$0xf]
        %v317 = vld [vmem:[%s241 + $0x4] sm:$0xf]
        %v318 = vld [vmem:[%s241 + $0x8] sm:$0xf]
        %v319 = vld [vmem:[%s241 + $0xc] sm:$0xf]
        %v320 = vld [vmem:[%s241 + $0x10] sm:$0xf]
        %v321 = vld [vmem:[%s241 + $0x14] sm:$0xf]
        %v322 = vld [vmem:[%s241 + $0x18] sm:$0xf]
        %v323 = vld [vmem:[%s241 + $0x1c] sm:$0xf]
        %v324 = vld [vmem:[%s241 + $0x20] sm:$0xf]
        %v325 = vld [vmem:[%s241 + $0x24] sm:$0xf]
        %v326 = vld [vmem:[%s241 + $0x28] sm:$0xf]
        %v327 = vld [vmem:[%s241 + $0x2c] sm:$0xf]
        %v328 = vld [vmem:[%s241 + $0x30] sm:$0xf]
        %v329 = vld [vmem:[%s241 + $0x34] sm:$0xf]
        %v330 = vld [vmem:[%s241 + $0x38] sm:$0xf]
        %v331 = vld [vmem:[%s241 + $0x3c] sm:$0xf]
        %v332 = vld [vmem:[%s241 + $0x40] sm:$0xf]
        %v333 = vld [vmem:[%s241 + $0x44] sm:$0xf]
        %v334 = vld [vmem:[%s241 + $0x48] sm:$0xf]
        %v335 = vld [vmem:[%s241 + $0x4c] sm:$0xf]
        %v336 = vld [vmem:[%s241 + $0x50] sm:$0xf]
        %v337 = vld [vmem:[%s241 + $0x54] sm:$0xf]
        %v338 = vld [vmem:[%s241 + $0x58] sm:$0xf]
        %v339 = vld [vmem:[%s241 + $0x5c] sm:$0xf]
        %v340 = vld [vmem:[%s241 + $0x60] sm:$0xf]
        %v341 = vld [vmem:[%s241 + $0x64] sm:$0xf]
        %v342 = vld [vmem:[%s241 + $0x68] sm:$0xf]
        %v343 = vld [vmem:[%s241 + $0x6c] sm:$0xf]
        %v344 = vld [vmem:[%s241 + $0x70] sm:$0xf]
        %v345 = vld [vmem:[%s241 + $0x74] sm:$0xf]
        %v346 = vld [vmem:[%s241 + $0x78] sm:$0xf]
        %v347 = vld [vmem:[%s241 + $0x7c] sm:$0xf]
        %v348 = vld [vmem:[#allocation4] sm:$0x1]
        %v350 = vlaneseq
        %v351 = vshrl.u32 %v350, 7
        %v352 = vsub.s32 0, %v351
        %v353 = vrot.slane %v348, %v352
        %v419 = vunpack.c.l.b16 %v252
        %v420 = vunpack.c.h.b16 %v252
        %v421 = vunpack.c.l.b16 %v253
        %v422 = vunpack.c.h.b16 %v253
        %v423 = vunpack.c.l.b16 %v254
        %v424 = vunpack.c.h.b16 %v254
        %v425 = vunpack.c.l.b16 %v255
        %v426 = vunpack.c.h.b16 %v255
        %v427 = vunpack.c.l.b16 %v256
        %v428 = vunpack.c.h.b16 %v256
        %v429 = vunpack.c.l.b16 %v257
        %v430 = vunpack.c.h.b16 %v257
        %v431 = vunpack.c.l.b16 %v258
        %v432 = vunpack.c.h.b16 %v258
        %v433 = vunpack.c.l.b16 %v259
        %v434 = vunpack.c.h.b16 %v259
        %v435 = vunpack.c.l.b16 %v260
        %v436 = vunpack.c.h.b16 %v260
        %v437 = vunpack.c.l.b16 %v261
        %v438 = vunpack.c.h.b16 %v261
        %v439 = vunpack.c.l.b16 %v262
        %v440 = vunpack.c.h.b16 %v262
        %v441 = vunpack.c.l.b16 %v263
        %v442 = vunpack.c.h.b16 %v263
        %v443 = vunpack.c.l.b16 %v264
        %v444 = vunpack.c.h.b16 %v264
        %v445 = vunpack.c.l.b16 %v265
        %v446 = vunpack.c.h.b16 %v265
        %v447 = vunpack.c.l.b16 %v266
        %v448 = vunpack.c.h.b16 %v266
        %v449 = vunpack.c.l.b16 %v267
        %v450 = vunpack.c.h.b16 %v267
        %v451 = vunpack.c.l.b16 %v268
        %v452 = vunpack.c.h.b16 %v268
        %v453 = vunpack.c.l.b16 %v269
        %v454 = vunpack.c.h.b16 %v269
        %v455 = vunpack.c.l.b16 %v270
        %v456 = vunpack.c.h.b16 %v270
        %v457 = vunpack.c.l.b16 %v271
        %v458 = vunpack.c.h.b16 %v271
        %v459 = vunpack.c.l.b16 %v272
        %v460 = vunpack.c.h.b16 %v272
        %v461 = vunpack.c.l.b16 %v273
        %v462 = vunpack.c.h.b16 %v273
        %v463 = vunpack.c.l.b16 %v274
        %v464 = vunpack.c.h.b16 %v274
        %v465 = vunpack.c.l.b16 %v275
        %v466 = vunpack.c.h.b16 %v275
        %v467 = vunpack.c.l.b16 %v276
        %v468 = vunpack.c.h.b16 %v276
        %v469 = vunpack.c.l.b16 %v277
        %v470 = vunpack.c.h.b16 %v277
        %v471 = vunpack.c.l.b16 %v278
        %v472 = vunpack.c.h.b16 %v278
        %v473 = vunpack.c.l.b16 %v279
        %v474 = vunpack.c.h.b16 %v279
        %v475 = vunpack.c.l.b16 %v280
        %v476 = vunpack.c.h.b16 %v280
        %v477 = vunpack.c.l.b16 %v281
        %v478 = vunpack.c.h.b16 %v281
        %v479 = vunpack.c.l.b16 %v282
        %v480 = vunpack.c.h.b16 %v282
        %v481 = vunpack.c.l.b16 %v283
        %v482 = vunpack.c.h.b16 %v283
        %v483 = vunpack.c.l.b16 %v284
        %v484 = vunpack.c.h.b16 %v284
        %v485 = vunpack.c.l.b16 %v285
        %v486 = vunpack.c.h.b16 %v285
        %v487 = vunpack.c.l.b16 %v286
        %v488 = vunpack.c.h.b16 %v286
        %v489 = vunpack.c.l.b16 %v287
        %v490 = vunpack.c.h.b16 %v287
        %v491 = vunpack.c.l.b16 %v288
        %v492 = vunpack.c.h.b16 %v288
        %v493 = vunpack.c.l.b16 %v289
        %v494 = vunpack.c.h.b16 %v289
        %v495 = vunpack.c.l.b16 %v290
        %v496 = vunpack.c.h.b16 %v290
        %v497 = vunpack.c.l.b16 %v291
        %v498 = vunpack.c.h.b16 %v291
        %v499 = vunpack.c.l.b16 %v292
        %v500 = vunpack.c.h.b16 %v292
        %v501 = vunpack.c.l.b16 %v293
        %v502 = vunpack.c.h.b16 %v293
        %v503 = vunpack.c.l.b16 %v294
        %v504 = vunpack.c.h.b16 %v294
        %v505 = vunpack.c.l.b16 %v295
        %v506 = vunpack.c.h.b16 %v295
        %v507 = vunpack.c.l.b16 %v296
        %v508 = vunpack.c.h.b16 %v296
        %v509 = vunpack.c.l.b16 %v297
        %v510 = vunpack.c.h.b16 %v297
        %v511 = vunpack.c.l.b16 %v298
        %v512 = vunpack.c.h.b16 %v298
        %v513 = vunpack.c.l.b16 %v299
        %v514 = vunpack.c.h.b16 %v299
        %v515 = vunpack.c.l.b16 %v300
        %v516 = vunpack.c.h.b16 %v300
        %v517 = vunpack.c.l.b16 %v301
        %v518 = vunpack.c.h.b16 %v301
        %v519 = vunpack.c.l.b16 %v302
        %v520 = vunpack.c.h.b16 %v302
        %v521 = vunpack.c.l.b16 %v303
        %v522 = vunpack.c.h.b16 %v303
        %v523 = vunpack.c.l.b16 %v304
        %v524 = vunpack.c.h.b16 %v304
        %v525 = vunpack.c.l.b16 %v305
        %v526 = vunpack.c.h.b16 %v305
        %v527 = vunpack.c.l.b16 %v306
        %v528 = vunpack.c.h.b16 %v306
        %v529 = vunpack.c.l.b16 %v307
        %v530 = vunpack.c.h.b16 %v307
        %v531 = vunpack.c.l.b16 %v308
        %v532 = vunpack.c.h.b16 %v308
        %v533 = vunpack.c.l.b16 %v309
        %v534 = vunpack.c.h.b16 %v309
        %v535 = vunpack.c.l.b16 %v310
        %v536 = vunpack.c.h.b16 %v310
        %v537 = vunpack.c.l.b16 %v311
        %v538 = vunpack.c.h.b16 %v311
        %v539 = vunpack.c.l.b16 %v312
        %v540 = vunpack.c.h.b16 %v312
        %v541 = vunpack.c.l.b16 %v313
        %v542 = vunpack.c.h.b16 %v313
        %v543 = vunpack.c.l.b16 %v314
        %v544 = vunpack.c.h.b16 %v314
        %v545 = vunpack.c.l.b16 %v315
        %v546 = vunpack.c.h.b16 %v315
        %v547 = vpack.c.b16 %v421, %v419
        %v548 = vpack.c.b16 %v422, %v420
        %v549 = vpack.c.b16 %v425, %v423
        %v550 = vpack.c.b16 %v426, %v424
        %v551 = vpack.c.b16 %v429, %v427
        %v552 = vpack.c.b16 %v430, %v428
        %v553 = vpack.c.b16 %v433, %v431
        %v554 = vpack.c.b16 %v434, %v432
        %v555 = vpack.c.b16 %v437, %v435
        %v556 = vpack.c.b16 %v438, %v436
        %v557 = vpack.c.b16 %v441, %v439
        %v558 = vpack.c.b16 %v442, %v440
        %v559 = vpack.c.b16 %v445, %v443
        %v560 = vpack.c.b16 %v446, %v444
        %v561 = vpack.c.b16 %v449, %v447
        %v562 = vpack.c.b16 %v450, %v448
        %v563 = vpack.c.b16 %v453, %v451
        %v564 = vpack.c.b16 %v454, %v452
        %v565 = vpack.c.b16 %v457, %v455
        %v566 = vpack.c.b16 %v458, %v456
        %v567 = vpack.c.b16 %v461, %v459
        %v568 = vpack.c.b16 %v462, %v460
        %v569 = vpack.c.b16 %v465, %v463
        %v570 = vpack.c.b16 %v466, %v464
        %v571 = vpack.c.b16 %v469, %v467
        %v572 = vpack.c.b16 %v470, %v468
        %v573 = vpack.c.b16 %v473, %v471
        %v574 = vpack.c.b16 %v474, %v472
        %v575 = vpack.c.b16 %v477, %v475
        %v576 = vpack.c.b16 %v478, %v476
        %v577 = vpack.c.b16 %v481, %v479
        %v578 = vpack.c.b16 %v482, %v480
        %v579 = vpack.c.b16 %v485, %v483
        %v580 = vpack.c.b16 %v486, %v484
        %v581 = vpack.c.b16 %v489, %v487
        %v582 = vpack.c.b16 %v490, %v488
        %v583 = vpack.c.b16 %v493, %v491
        %v584 = vpack.c.b16 %v494, %v492
        %v585 = vpack.c.b16 %v497, %v495
        %v586 = vpack.c.b16 %v498, %v496
        %v587 = vpack.c.b16 %v501, %v499
        %v588 = vpack.c.b16 %v502, %v500
        %v589 = vpack.c.b16 %v505, %v503
        %v590 = vpack.c.b16 %v506, %v504
        %v591 = vpack.c.b16 %v509, %v507
        %v592 = vpack.c.b16 %v510, %v508
        %v593 = vpack.c.b16 %v513, %v511
        %v594 = vpack.c.b16 %v514, %v512
        %v595 = vpack.c.b16 %v517, %v515
        %v596 = vpack.c.b16 %v518, %v516
        %v597 = vpack.c.b16 %v521, %v519
        %v598 = vpack.c.b16 %v522, %v520
        %v599 = vpack.c.b16 %v525, %v523
        %v600 = vpack.c.b16 %v526, %v524
        %v601 = vpack.c.b16 %v529, %v527
        %v602 = vpack.c.b16 %v530, %v528
        %v603 = vpack.c.b16 %v533, %v531
        %v604 = vpack.c.b16 %v534, %v532
        %v605 = vpack.c.b16 %v537, %v535
        %v606 = vpack.c.b16 %v538, %v536
        %v607 = vpack.c.b16 %v541, %v539
        %v608 = vpack.c.b16 %v542, %v540
        %v609 = vpack.c.b16 %v545, %v543
        %v610 = vpack.c.b16 %v546, %v544
        %v707 = vunpack.c.l.b16 %v316
        %v708 = vunpack.c.l.b16 %v317
        %v709 = vunpack.c.l.b16 %v318
        %v710 = vunpack.c.l.b16 %v319
        %v711 = vunpack.c.l.b16 %v320
        %v712 = vunpack.c.l.b16 %v321
        %v713 = vunpack.c.l.b16 %v322
        %v714 = vunpack.c.l.b16 %v323
        %v715 = vunpack.c.l.b16 %v324
        %v716 = vunpack.c.l.b16 %v325
        %v717 = vunpack.c.l.b16 %v326
        %v718 = vunpack.c.l.b16 %v327
        %v719 = vunpack.c.l.b16 %v328
        %v720 = vunpack.c.l.b16 %v329
        %v721 = vunpack.c.l.b16 %v330
        %v722 = vunpack.c.l.b16 %v331
        %v723 = vunpack.c.l.b16 %v332
        %v724 = vunpack.c.l.b16 %v333
        %v725 = vunpack.c.l.b16 %v334
        %v726 = vunpack.c.l.b16 %v335
        %v727 = vunpack.c.l.b16 %v336
        %v728 = vunpack.c.l.b16 %v337
        %v729 = vunpack.c.l.b16 %v338
        %v730 = vunpack.c.l.b16 %v339
        %v731 = vunpack.c.l.b16 %v340
        %v732 = vunpack.c.l.b16 %v341
        %v733 = vunpack.c.l.b16 %v342
        %v734 = vunpack.c.l.b16 %v343
        %v735 = vunpack.c.l.b16 %v344
        %v736 = vunpack.c.l.b16 %v345
        %v737 = vunpack.c.l.b16 %v346
        %v738 = vunpack.c.l.b16 %v347
        %v739 = vpack.c.b16 %v708, %v707
        %v740 = vpack.c.b16 %v710, %v709
        %v741 = vpack.c.b16 %v712, %v711
        %v742 = vpack.c.b16 %v714, %v713
        %v743 = vpack.c.b16 %v716, %v715
        %v744 = vpack.c.b16 %v718, %v717
        %v745 = vpack.c.b16 %v720, %v719
        %v746 = vpack.c.b16 %v722, %v721
        %v747 = vpack.c.b16 %v724, %v723
        %v748 = vpack.c.b16 %v726, %v725
        %v749 = vpack.c.b16 %v728, %v727
        %v750 = vpack.c.b16 %v730, %v729
        %v751 = vpack.c.b16 %v732, %v731
        %v752 = vpack.c.b16 %v734, %v733
        %v753 = vpack.c.b16 %v736, %v735
        %v754 = vpack.c.b16 %v738, %v737
        %771 = vmatprep.subr.bf16.mxu0 0
        %772 = vmatpush1.bf16.msra.mxu0 %v739
        %773 = vmatprep.subr.bf16.mxu0 0
        %774 = vmatpush1.bf16.msra.mxu0 %v740
        %775 = vmatprep.subr.bf16.mxu0 0
        %776 = vmatpush1.bf16.msra.mxu0 %v741
        %777 = vmatprep.subr.bf16.mxu0 0
        %778 = vmatpush1.bf16.msra.mxu0 %v742
        %779 = vmatprep.subr.bf16.mxu0 0
        %780 = vmatpush1.bf16.msra.mxu0 %v743
        %781 = vmatprep.subr.bf16.mxu0 0
        %782 = vmatpush1.bf16.msra.mxu0 %v744
        %783 = vmatprep.subr.bf16.mxu0 0
        %784 = vmatpush1.bf16.msra.mxu0 %v745
        %785 = vmatprep.subr.bf16.mxu0 0
        %786 = vmatpush1.bf16.msra.mxu0 %v746
        %787 = vmatprep.subr.bf16.mxu0 0
        %788 = vmatpush1.bf16.msra.mxu0 %v747
        %789 = vmatprep.subr.bf16.mxu0 0
        %790 = vmatpush1.bf16.msra.mxu0 %v748
        %791 = vmatprep.subr.bf16.mxu0 0
        %792 = vmatpush1.bf16.msra.mxu0 %v749
        %793 = vmatprep.subr.bf16.mxu0 0
        %794 = vmatpush1.bf16.msra.mxu0 %v750
        %795 = vmatprep.subr.bf16.mxu0 0
        %796 = vmatpush1.bf16.msra.mxu0 %v751
        %797 = vmatprep.subr.bf16.mxu0 0
        %798 = vmatpush1.bf16.msra.mxu0 %v752
        %799 = vmatprep.subr.bf16.mxu0 0
        %800 = vmatpush1.bf16.msra.mxu0 %v753
        %801 = vmatprep.subr.bf16.mxu0 0
        %802 = vmatpush1.bf16.msra.mxu0 %v754
        %803 = vmatprep.mubr.bf16.mxu0 %v548
        %804 = vmatmul.mubr.bf16.gmra.mrb[0].mxu0 %v547
        %v805 = vpop.f32.mrb[0].mxu0
        %v806 = vadd.f32 %v353, %v805
        %v807 = vpop.f32.mrb[0].mxu0
        %v808 = vpop.f32.mrb[0].mxu0
        %v809 = vadd.f32 %v353, %v808
        %v810 = vpop.f32.mrb[0].mxu0
        %811 = vmatprep.mubr.bf16.mxu0 %v550
        %812 = vmatmul.mubr.bf16.gmra.mrb[0].mxu0 %v549
        %v813 = vpop.f32.mrb[0].mxu0
        %v814 = vadd.f32 %v353, %v813
        %v815 = vpop.f32.mrb[0].mxu0
        %v816 = vpop.f32.mrb[0].mxu0
        %v817 = vadd.f32 %v353, %v816
        %v818 = vpop.f32.mrb[0].mxu0
        %819 = vmatprep.mubr.bf16.mxu0 %v552
        %820 = vmatmul.mubr.bf16.gmra.mrb[0].mxu0 %v551
        %v821 = vpop.f32.mrb[0].mxu0
        %v822 = vadd.f32 %v353, %v821
        %v823 = vpop.f32.mrb[0].mxu0
        %v824 = vpop.f32.mrb[0].mxu0
        %v825 = vadd.f32 %v353, %v824
        %v826 = vpop.f32.mrb[0].mxu0
        %827 = vmatprep.mubr.bf16.mxu0 %v554
        %828 = vmatmul.mubr.bf16.gmra.mrb[0].mxu0 %v553
        %v829 = vpop.f32.mrb[0].mxu0
        %v830 = vadd.f32 %v353, %v829
        %v831 = vpop.f32.mrb[0].mxu0
        %v832 = vpop.f32.mrb[0].mxu0
        %v833 = vadd.f32 %v353, %v832
        %v834 = vpop.f32.mrb[0].mxu0
        %835 = vmatprep.mubr.bf16.mxu0 %v556
        %836 = vmatmul.mubr.bf16.gmra.mrb[0].mxu0 %v555
        %v837 = vpop.f32.mrb[0].mxu0
        %v838 = vadd.f32 %v353, %v837
        %v839 = vpop.f32.mrb[0].mxu0
        %v840 = vpop.f32.mrb[0].mxu0
        %v841 = vadd.f32 %v353, %v840
        %v842 = vpop.f32.mrb[0].mxu0
        %843 = vmatprep.mubr.bf16.mxu0 %v558
        %844 = vmatmul.mubr.bf16.gmra.mrb[0].mxu0 %v557
        %v845 = vpop.f32.mrb[0].mxu0
        %v846 = vadd.f32 %v353, %v845
        %v847 = vpop.f32.mrb[0].mxu0
        %v848 = vpop.f32.mrb[0].mxu0
        %v849 = vadd.f32 %v353, %v848
        %v850 = vpop.f32.mrb[0].mxu0
        %851 = vmatprep.mubr.bf16.mxu0 %v560
        %852 = vmatmul.mubr.bf16.gmra.mrb[0].mxu0 %v559
        %v853 = vpop.f32.mrb[0].mxu0
        %v854 = vadd.f32 %v353, %v853
        %v855 = vpop.f32.mrb[0].mxu0
        %v856 = vpop.f32.mrb[0].mxu0
        %v857 = vadd.f32 %v353, %v856
        %v858 = vpop.f32.mrb[0].mxu0
        %859 = vmatprep.mubr.bf16.mxu0 %v562
        %860 = vmatmul.mubr.bf16.gmra.mrb[0].mxu0 %v561
        %v861 = vpop.f32.mrb[0].mxu0
        %v862 = vadd.f32 %v353, %v861
        %v863 = vpop.f32.mrb[0].mxu0
        %v864 = vpop.f32.mrb[0].mxu0
        %v865 = vadd.f32 %v353, %v864
        %v866 = vpop.f32.mrb[0].mxu0
        %867 = vmatprep.mubr.bf16.mxu0 %v564
        %868 = vmatmul.mubr.bf16.gmra.mrb[0].mxu0 %v563
        %v869 = vpop.f32.mrb[0].mxu0
        %v870 = vadd.f32 %v353, %v869
        %v871 = vpop.f32.mrb[0].mxu0
        %v872 = vpop.f32.mrb[0].mxu0
        %v873 = vadd.f32 %v353, %v872
        %v874 = vpop.f32.mrb[0].mxu0
        %875 = vmatprep.mubr.bf16.mxu0 %v566
        %876 = vmatmul.mubr.bf16.gmra.mrb[0].mxu0 %v565
        %v877 = vpop.f32.mrb[0].mxu0
        %v878 = vadd.f32 %v353, %v877
        %v879 = vpop.f32.mrb[0].mxu0
        %v880 = vpop.f32.mrb[0].mxu0
        %v881 = vadd.f32 %v353, %v880
        %v882 = vpop.f32.mrb[0].mxu0
        %883 = vmatprep.mubr.bf16.mxu0 %v568
        %884 = vmatmul.mubr.bf16.gmra.mrb[0].mxu0 %v567
        %v885 = vpop.f32.mrb[0].mxu0
        %v886 = vadd.f32 %v353, %v885
        %v887 = vpop.f32.mrb[0].mxu0
        %v888 = vpop.f32.mrb[0].mxu0
        %v889 = vadd.f32 %v353, %v888
        %v890 = vpop.f32.mrb[0].mxu0
        %891 = vmatprep.mubr.bf16.mxu0 %v570
        %892 = vmatmul.mubr.bf16.gmra.mrb[0].mxu0 %v569
        %v893 = vpop.f32.mrb[0].mxu0
        %v894 = vadd.f32 %v353, %v893
        %v895 = vpop.f32.mrb[0].mxu0
        %v896 = vpop.f32.mrb[0].mxu0
        %v897 = vadd.f32 %v353, %v896
        %v898 = vpop.f32.mrb[0].mxu0
        %899 = vmatprep.mubr.bf16.mxu0 %v572
        %900 = vmatmul.mubr.bf16.gmra.mrb[0].mxu0 %v571
        %v901 = vpop.f32.mrb[0].mxu0
        %v902 = vadd.f32 %v353, %v901
        %v903 = vpop.f32.mrb[0].mxu0
        %v904 = vpop.f32.mrb[0].mxu0
        %v905 = vadd.f32 %v353, %v904
        %v906 = vpop.f32.mrb[0].mxu0
        %907 = vmatprep.mubr.bf16.mxu0 %v574
        %908 = vmatmul.mubr.bf16.gmra.mrb[0].mxu0 %v573
        %v909 = vpop.f32.mrb[0].mxu0
        %v910 = vadd.f32 %v353, %v909
        %v911 = vpop.f32.mrb[0].mxu0
        %v912 = vpop.f32.mrb[0].mxu0
        %v913 = vadd.f32 %v353, %v912
        %v914 = vpop.f32.mrb[0].mxu0
        %915 = vmatprep.mubr.bf16.mxu0 %v576
        %916 = vmatmul.mubr.bf16.gmra.mrb[0].mxu0 %v575
        %v917 = vpop.f32.mrb[0].mxu0
        %v918 = vadd.f32 %v353, %v917
        %v919 = vpop.f32.mrb[0].mxu0
        %v920 = vpop.f32.mrb[0].mxu0
        %v921 = vadd.f32 %v353, %v920
        %v922 = vpop.f32.mrb[0].mxu0
        %923 = vmatprep.mubr.bf16.mxu0 %v578
        %924 = vmatmul.mubr.bf16.gmra.mrb[0].mxu0 %v577
        %v925 = vpop.f32.mrb[0].mxu0
        %v926 = vadd.f32 %v353, %v925
        %v927 = vpop.f32.mrb[0].mxu0
        %v928 = vpop.f32.mrb[0].mxu0
        %v929 = vadd.f32 %v353, %v928
        %v930 = vpop.f32.mrb[0].mxu0
        %931 = vmatprep.mubr.bf16.mxu0 %v580
        %932 = vmatmul.mubr.bf16.gmra.mrb[0].mxu0 %v579
        %v933 = vpop.f32.mrb[0].mxu0
        %v934 = vadd.f32 %v353, %v933
        %v935 = vpop.f32.mrb[0].mxu0
        %v936 = vpop.f32.mrb[0].mxu0
        %v937 = vadd.f32 %v353, %v936
        %v938 = vpop.f32.mrb[0].mxu0
        %939 = vmatprep.mubr.bf16.mxu0 %v582
        %940 = vmatmul.mubr.bf16.gmra.mrb[0].mxu0 %v581
        %v941 = vpop.f32.mrb[0].mxu0
        %v942 = vadd.f32 %v353, %v941
        %v943 = vpop.f32.mrb[0].mxu0
        %v944 = vpop.f32.mrb[0].mxu0
        %v945 = vadd.f32 %v353, %v944
        %v946 = vpop.f32.mrb[0].mxu0
        %947 = vmatprep.mubr.bf16.mxu0 %v584
        %948 = vmatmul.mubr.bf16.gmra.mrb[0].mxu0 %v583
        %v949 = vpop.f32.mrb[0].mxu0
        %v950 = vadd.f32 %v353, %v949
        %v951 = vpop.f32.mrb[0].mxu0
        %v952 = vpop.f32.mrb[0].mxu0
        %v953 = vadd.f32 %v353, %v952
        %v954 = vpop.f32.mrb[0].mxu0
        %955 = vmatprep.mubr.bf16.mxu0 %v586
        %956 = vmatmul.mubr.bf16.gmra.mrb[0].mxu0 %v585
        %v957 = vpop.f32.mrb[0].mxu0
        %v958 = vadd.f32 %v353, %v957
        %v959 = vpop.f32.mrb[0].mxu0
        %v960 = vpop.f32.mrb[0].mxu0
        %v961 = vadd.f32 %v353, %v960
        %v962 = vpop.f32.mrb[0].mxu0
        %963 = vmatprep.mubr.bf16.mxu0 %v588
        %964 = vmatmul.mubr.bf16.gmra.mrb[0].mxu0 %v587
        %v965 = vpop.f32.mrb[0].mxu0
        %v966 = vadd.f32 %v353, %v965
        %v967 = vpop.f32.mrb[0].mxu0
        %v968 = vpop.f32.mrb[0].mxu0
        %v969 = vadd.f32 %v353, %v968
        %v970 = vpop.f32.mrb[0].mxu0
        %971 = vmatprep.mubr.bf16.mxu0 %v590
        %972 = vmatmul.mubr.bf16.gmra.mrb[0].mxu0 %v589
        %v973 = vpop.f32.mrb[0].mxu0
        %v974 = vadd.f32 %v353, %v973
        %v975 = vpop.f32.mrb[0].mxu0
        %v976 = vpop.f32.mrb[0].mxu0
        %v977 = vadd.f32 %v353, %v976
        %v978 = vpop.f32.mrb[0].mxu0
        %979 = vmatprep.mubr.bf16.mxu0 %v592
        %980 = vmatmul.mubr.bf16.gmra.mrb[0].mxu0 %v591
        %v981 = vpop.f32.mrb[0].mxu0
        %v982 = vadd.f32 %v353, %v981
        %v983 = vpop.f32.mrb[0].mxu0
        %v984 = vpop.f32.mrb[0].mxu0
        %v985 = vadd.f32 %v353, %v984
        %v986 = vpop.f32.mrb[0].mxu0
        %987 = vmatprep.mubr.bf16.mxu0 %v594
        %988 = vmatmul.mubr.bf16.gmra.mrb[0].mxu0 %v593
        %v989 = vpop.f32.mrb[0].mxu0
        %v990 = vadd.f32 %v353, %v989
        %v991 = vpop.f32.mrb[0].mxu0
        %v992 = vpop.f32.mrb[0].mxu0
        %v993 = vadd.f32 %v353, %v992
        %v994 = vpop.f32.mrb[0].mxu0
        %995 = vmatprep.mubr.bf16.mxu0 %v596
        %996 = vmatmul.mubr.bf16.gmra.mrb[0].mxu0 %v595
        %v997 = vpop.f32.mrb[0].mxu0
        %v998 = vadd.f32 %v353, %v997
        %v999 = vpop.f32.mrb[0].mxu0
        %v1000 = vpop.f32.mrb[0].mxu0
        %v1001 = vadd.f32 %v353, %v1000
        %v1002 = vpop.f32.mrb[0].mxu0
        %1003 = vmatprep.mubr.bf16.mxu0 %v598
        %1004 = vmatmul.mubr.bf16.gmra.mrb[0].mxu0 %v597
        %v1005 = vpop.f32.mrb[0].mxu0
        %v1006 = vadd.f32 %v353, %v1005
        %v1007 = vpop.f32.mrb[0].mxu0
        %v1008 = vpop.f32.mrb[0].mxu0
        %v1009 = vadd.f32 %v353, %v1008
        %v1010 = vpop.f32.mrb[0].mxu0
        %1011 = vmatprep.mubr.bf16.mxu0 %v600
        %1012 = vmatmul.mubr.bf16.gmra.mrb[0].mxu0 %v599
        %v1013 = vpop.f32.mrb[0].mxu0
        %v1014 = vadd.f32 %v353, %v1013
        %v1015 = vpop.f32.mrb[0].mxu0
        %v1016 = vpop.f32.mrb[0].mxu0
        %v1017 = vadd.f32 %v353, %v1016
        %v1018 = vpop.f32.mrb[0].mxu0
        %1019 = vmatprep.mubr.bf16.mxu0 %v602
        %1020 = vmatmul.mubr.bf16.gmra.mrb[0].mxu0 %v601
        %v1021 = vpop.f32.mrb[0].mxu0
        %v1022 = vadd.f32 %v353, %v1021
        %v1023 = vpop.f32.mrb[0].mxu0
        %v1024 = vpop.f32.mrb[0].mxu0
        %v1025 = vadd.f32 %v353, %v1024
        %v1026 = vpop.f32.mrb[0].mxu0
        %1027 = vmatprep.mubr.bf16.mxu0 %v604
        %1028 = vmatmul.mubr.bf16.gmra.mrb[0].mxu0 %v603
        %v1029 = vpop.f32.mrb[0].mxu0
        %v1030 = vadd.f32 %v353, %v1029
        %v1031 = vpop.f32.mrb[0].mxu0
        %v1032 = vpop.f32.mrb[0].mxu0
        %v1033 = vadd.f32 %v353, %v1032
        %v1034 = vpop.f32.mrb[0].mxu0
        %1035 = vmatprep.mubr.bf16.mxu0 %v606
        %1036 = vmatmul.mubr.bf16.gmra.mrb[0].mxu0 %v605
        %v1037 = vpop.f32.mrb[0].mxu0
        %v1038 = vadd.f32 %v353, %v1037
        %v1039 = vpop.f32.mrb[0].mxu0
        %v1040 = vpop.f32.mrb[0].mxu0
        %v1041 = vadd.f32 %v353, %v1040
        %v1042 = vpop.f32.mrb[0].mxu0
        %1043 = vmatprep.mubr.bf16.mxu0 %v608
        %1044 = vmatmul.mubr.bf16.gmra.mrb[0].mxu0 %v607
        %v1045 = vpop.f32.mrb[0].mxu0
        %v1046 = vadd.f32 %v353, %v1045
        %v1047 = vpop.f32.mrb[0].mxu0
        %v1048 = vpop.f32.mrb[0].mxu0
        %v1049 = vadd.f32 %v353, %v1048
        %v1050 = vpop.f32.mrb[0].mxu0
        %1051 = vmatprep.mubr.bf16.mxu0 %v610
        %1052 = vmatmul.mubr.bf16.gmra.mrb[0].mxu0 %v609
        %v1053 = vpop.f32.mrb[0].mxu0
        %v1054 = vadd.f32 %v353, %v1053
        %v1055 = vpop.f32.mrb[0].mxu0
        %v1056 = vpop.f32.mrb[0].mxu0
        %v1057 = vadd.f32 %v353, %v1056
        %v1058 = vpop.f32.mrb[0].mxu0
        %1059 = vdwg.mxu0
        %v1060 = vpack.c.bf16 %v809, %v806
        %v1061 = vpack.c.bf16 %v817, %v814
        %v1062 = vpack.c.bf16 %v825, %v822
        %v1063 = vpack.c.bf16 %v833, %v830
        %v1064 = vpack.c.bf16 %v841, %v838
        %v1065 = vpack.c.bf16 %v849, %v846
        %v1066 = vpack.c.bf16 %v857, %v854
        %v1067 = vpack.c.bf16 %v865, %v862
        %v1068 = vpack.c.bf16 %v873, %v870
        %v1069 = vpack.c.bf16 %v881, %v878
        %v1070 = vpack.c.bf16 %v889, %v886
        %v1071 = vpack.c.bf16 %v897, %v894
        %v1072 = vpack.c.bf16 %v905, %v902
        %v1073 = vpack.c.bf16 %v913, %v910
        %v1074 = vpack.c.bf16 %v921, %v918
        %v1075 = vpack.c.bf16 %v929, %v926
        %v1076 = vpack.c.bf16 %v937, %v934
        %v1077 = vpack.c.bf16 %v945, %v942
        %v1078 = vpack.c.bf16 %v953, %v950
        %v1079 = vpack.c.bf16 %v961, %v958
        %v1080 = vpack.c.bf16 %v969, %v966
        %v1081 = vpack.c.bf16 %v977, %v974
        %v1082 = vpack.c.bf16 %v985, %v982
        %v1083 = vpack.c.bf16 %v993, %v990
        %v1084 = vpack.c.bf16 %v1001, %v998
        %v1085 = vpack.c.bf16 %v1009, %v1006
        %v1086 = vpack.c.bf16 %v1017, %v1014
        %v1087 = vpack.c.bf16 %v1025, %v1022
        %v1088 = vpack.c.bf16 %v1033, %v1030
        %v1089 = vpack.c.bf16 %v1041, %v1038
        %v1090 = vpack.c.bf16 %v1049, %v1046
        %v1091 = vpack.c.bf16 %v1057, %v1054
        %v1124 = vunpack.c.l.b16 %v1060
        %v1125 = vunpack.c.h.b16 %v1060
        %v1126 = vunpack.c.l.b16 %v1061
        %v1127 = vunpack.c.h.b16 %v1061
        %v1128 = vunpack.c.l.b16 %v1062
        %v1129 = vunpack.c.h.b16 %v1062
        %v1130 = vunpack.c.l.b16 %v1063
        %v1131 = vunpack.c.h.b16 %v1063
        %v1132 = vunpack.c.l.b16 %v1064
        %v1133 = vunpack.c.h.b16 %v1064
        %v1134 = vunpack.c.l.b16 %v1065
        %v1135 = vunpack.c.h.b16 %v1065
        %v1136 = vunpack.c.l.b16 %v1066
        %v1137 = vunpack.c.h.b16 %v1066
        %v1138 = vunpack.c.l.b16 %v1067
        %v1139 = vunpack.c.h.b16 %v1067
        %v1140 = vunpack.c.l.b16 %v1068
        %v1141 = vunpack.c.h.b16 %v1068
        %v1142 = vunpack.c.l.b16 %v1069
        %v1143 = vunpack.c.h.b16 %v1069
        %v1144 = vunpack.c.l.b16 %v1070
        %v1145 = vunpack.c.h.b16 %v1070
        %v1146 = vunpack.c.l.b16 %v1071
        %v1147 = vunpack.c.h.b16 %v1071
        %v1148 = vunpack.c.l.b16 %v1072
        %v1149 = vunpack.c.h.b16 %v1072
        %v1150 = vunpack.c.l.b16 %v1073
        %v1151 = vunpack.c.h.b16 %v1073
        %v1152 = vunpack.c.l.b16 %v1074
        %v1153 = vunpack.c.h.b16 %v1074
        %v1154 = vunpack.c.l.b16 %v1075
        %v1155 = vunpack.c.h.b16 %v1075
        %v1156 = vunpack.c.l.b16 %v1076
        %v1157 = vunpack.c.h.b16 %v1076
        %v1158 = vunpack.c.l.b16 %v1077
        %v1159 = vunpack.c.h.b16 %v1077
        %v1160 = vunpack.c.l.b16 %v1078
        %v1161 = vunpack.c.h.b16 %v1078
        %v1162 = vunpack.c.l.b16 %v1079
        %v1163 = vunpack.c.h.b16 %v1079
        %v1164 = vunpack.c.l.b16 %v1080
        %v1165 = vunpack.c.h.b16 %v1080
        %v1166 = vunpack.c.l.b16 %v1081
        %v1167 = vunpack.c.h.b16 %v1081
        %v1168 = vunpack.c.l.b16 %v1082
        %v1169 = vunpack.c.h.b16 %v1082
        %v1170 = vunpack.c.l.b16 %v1083
        %v1171 = vunpack.c.h.b16 %v1083
        %v1172 = vunpack.c.l.b16 %v1084
        %v1173 = vunpack.c.h.b16 %v1084
        %v1174 = vunpack.c.l.b16 %v1085
        %v1175 = vunpack.c.h.b16 %v1085
        %v1176 = vunpack.c.l.b16 %v1086
        %v1177 = vunpack.c.h.b16 %v1086
        %v1178 = vunpack.c.l.b16 %v1087
        %v1179 = vunpack.c.h.b16 %v1087
        %v1180 = vunpack.c.l.b16 %v1088
        %v1181 = vunpack.c.h.b16 %v1088
        %v1182 = vunpack.c.l.b16 %v1089
        %v1183 = vunpack.c.h.b16 %v1089
        %v1184 = vunpack.c.l.b16 %v1090
        %v1185 = vunpack.c.h.b16 %v1090
        %v1186 = vunpack.c.l.b16 %v1091
        %v1187 = vunpack.c.h.b16 %v1091
        %v1188 = vpack.c.b16 %v1124, %v1124
        %v1189 = vpack.c.b16 %v1125, %v1125
        %v1190 = vpack.c.b16 %v1126, %v1126
        %v1191 = vpack.c.b16 %v1127, %v1127
        %v1192 = vpack.c.b16 %v1128, %v1128
        %v1193 = vpack.c.b16 %v1129, %v1129
        %v1194 = vpack.c.b16 %v1130, %v1130
        %v1195 = vpack.c.b16 %v1131, %v1131
        %v1196 = vpack.c.b16 %v1132, %v1132
        %v1197 = vpack.c.b16 %v1133, %v1133
        %v1198 = vpack.c.b16 %v1134, %v1134
        %v1199 = vpack.c.b16 %v1135, %v1135
        %v1200 = vpack.c.b16 %v1136, %v1136
        %v1201 = vpack.c.b16 %v1137, %v1137
        %v1202 = vpack.c.b16 %v1138, %v1138
        %v1203 = vpack.c.b16 %v1139, %v1139
        %v1204 = vpack.c.b16 %v1140, %v1140
        %v1205 = vpack.c.b16 %v1141, %v1141
        %v1206 = vpack.c.b16 %v1142, %v1142
        %v1207 = vpack.c.b16 %v1143, %v1143
        %v1208 = vpack.c.b16 %v1144, %v1144
        %v1209 = vpack.c.b16 %v1145, %v1145
        %v1210 = vpack.c.b16 %v1146, %v1146
        %v1211 = vpack.c.b16 %v1147, %v1147
        %v1212 = vpack.c.b16 %v1148, %v1148
        %v1213 = vpack.c.b16 %v1149, %v1149
        %v1214 = vpack.c.b16 %v1150, %v1150
        %v1215 = vpack.c.b16 %v1151, %v1151
        %v1216 = vpack.c.b16 %v1152, %v1152
        %v1217 = vpack.c.b16 %v1153, %v1153
        %v1218 = vpack.c.b16 %v1154, %v1154
        %v1219 = vpack.c.b16 %v1155, %v1155
        %v1220 = vpack.c.b16 %v1156, %v1156
        %v1221 = vpack.c.b16 %v1157, %v1157
        %v1222 = vpack.c.b16 %v1158, %v1158
        %v1223 = vpack.c.b16 %v1159, %v1159
        %v1224 = vpack.c.b16 %v1160, %v1160
        %v1225 = vpack.c.b16 %v1161, %v1161
        %v1226 = vpack.c.b16 %v1162, %v1162
        %v1227 = vpack.c.b16 %v1163, %v1163
        %v1228 = vpack.c.b16 %v1164, %v1164
        %v1229 = vpack.c.b16 %v1165, %v1165
        %v1230 = vpack.c.b16 %v1166, %v1166
        %v1231 = vpack.c.b16 %v1167, %v1167
        %v1232 = vpack.c.b16 %v1168, %v1168
        %v1233 = vpack.c.b16 %v1169, %v1169
        %v1234 = vpack.c.b16 %v1170, %v1170
        %v1235 = vpack.c.b16 %v1171, %v1171
        %v1236 = vpack.c.b16 %v1172, %v1172
        %v1237 = vpack.c.b16 %v1173, %v1173
        %v1238 = vpack.c.b16 %v1174, %v1174
        %v1239 = vpack.c.b16 %v1175, %v1175
        %v1240 = vpack.c.b16 %v1176, %v1176
        %v1241 = vpack.c.b16 %v1177, %v1177
        %v1242 = vpack.c.b16 %v1178, %v1178
        %v1243 = vpack.c.b16 %v1179, %v1179
        %v1244 = vpack.c.b16 %v1180, %v1180
        %v1245 = vpack.c.b16 %v1181, %v1181
        %v1246 = vpack.c.b16 %v1182, %v1182
        %v1247 = vpack.c.b16 %v1183, %v1183
        %v1248 = vpack.c.b16 %v1184, %v1184
        %v1249 = vpack.c.b16 %v1185, %v1185
        %v1250 = vpack.c.b16 %v1186, %v1186
        %v1251 = vpack.c.b16 %v1187, %v1187
        %1316 = vst [vmem:[%s249] sm:$0xf] %v1188
        %1317 = vst [vmem:[%s249 + $0x4] sm:$0xf] %v1189
        %1318 = vst [vmem:[%s249 + $0x8] sm:$0xf] %v1190
        %1319 = vst [vmem:[%s249 + $0xc] sm:$0xf] %v1191
        %1320 = vst [vmem:[%s249 + $0x10] sm:$0xf] %v1192
        %1321 = vst [vmem:[%s249 + $0x14] sm:$0xf] %v1193
        %1322 = vst [vmem:[%s249 + $0x18] sm:$0xf] %v1194
        %1323 = vst [vmem:[%s249 + $0x1c] sm:$0xf] %v1195
        %1324 = vst [vmem:[%s249 + $0x20] sm:$0xf] %v1196
        %1325 = vst [vmem:[%s249 + $0x24] sm:$0xf] %v1197
        %1326 = vst [vmem:[%s249 + $0x28] sm:$0xf] %v1198
        %1327 = vst [vmem:[%s249 + $0x2c] sm:$0xf] %v1199
        %1328 = vst [vmem:[%s249 + $0x30] sm:$0xf] %v1200
        %1329 = vst [vmem:[%s249 + $0x34] sm:$0xf] %v1201
        %1330 = vst [vmem:[%s249 + $0x38] sm:$0xf] %v1202
        %1331 = vst [vmem:[%s249 + $0x3c] sm:$0xf] %v1203
        %1332 = vst [vmem:[%s249 + $0x40] sm:$0xf] %v1204
        %1333 = vst [vmem:[%s249 + $0x44] sm:$0xf] %v1205
        %1334 = vst [vmem:[%s249 + $0x48] sm:$0xf] %v1206
        %1335 = vst [vmem:[%s249 + $0x4c] sm:$0xf] %v1207
        %1336 = vst [vmem:[%s249 + $0x50] sm:$0xf] %v1208
        %1337 = vst [vmem:[%s249 + $0x54] sm:$0xf] %v1209
        %1338 = vst [vmem:[%s249 + $0x58] sm:$0xf] %v1210
        %1339 = vst [vmem:[%s249 + $0x5c] sm:$0xf] %v1211
        %1340 = vst [vmem:[%s249 + $0x60] sm:$0xf] %v1212
        %1341 = vst [vmem:[%s249 + $0x64] sm:$0xf] %v1213
        %1342 = vst [vmem:[%s249 + $0x68] sm:$0xf] %v1214
        %1343 = vst [vmem:[%s249 + $0x6c] sm:$0xf] %v1215
        %1344 = vst [vmem:[%s249 + $0x70] sm:$0xf] %v1216
        %1345 = vst [vmem:[%s249 + $0x74] sm:$0xf] %v1217
        %1346 = vst [vmem:[%s249 + $0x78] sm:$0xf] %v1218
        %1347 = vst [vmem:[%s249 + $0x7c] sm:$0xf] %v1219
        %1348 = vst [vmem:[%s249 + $0x80] sm:$0xf] %v1220
        %1349 = vst [vmem:[%s249 + $0x84] sm:$0xf] %v1221
        %1350 = vst [vmem:[%s249 + $0x88] sm:$0xf] %v1222
        %1351 = vst [vmem:[%s249 + $0x8c] sm:$0xf] %v1223
        %1352 = vst [vmem:[%s249 + $0x90] sm:$0xf] %v1224
        %1353 = vst [vmem:[%s249 + $0x94] sm:$0xf] %v1225
        %1354 = vst [vmem:[%s249 + $0x98] sm:$0xf] %v1226
        %1355 = vst [vmem:[%s249 + $0x9c] sm:$0xf] %v1227
        %1356 = vst [vmem:[%s249 + $0xa0] sm:$0xf] %v1228
        %1357 = vst [vmem:[%s249 + $0xa4] sm:$0xf] %v1229
        %1358 = vst [vmem:[%s249 + $0xa8] sm:$0xf] %v1230
        %1359 = vst [vmem:[%s249 + $0xac] sm:$0xf] %v1231
        %1360 = vst [vmem:[%s249 + $0xb0] sm:$0xf] %v1232
        %1361 = vst [vmem:[%s249 + $0xb4] sm:$0xf] %v1233
        %1362 = vst [vmem:[%s249 + $0xb8] sm:$0xf] %v1234
        %1363 = vst [vmem:[%s249 + $0xbc] sm:$0xf] %v1235
        %1364 = vst [vmem:[%s249 + $0xc0] sm:$0xf] %v1236
        %1365 = vst [vmem:[%s249 + $0xc4] sm:$0xf] %v1237
        %1366 = vst [vmem:[%s249 + $0xc8] sm:$0xf] %v1238
        %1367 = vst [vmem:[%s249 + $0xcc] sm:$0xf] %v1239
        %1368 = vst [vmem:[%s249 + $0xd0] sm:$0xf] %v1240
        %1369 = vst [vmem:[%s249 + $0xd4] sm:$0xf] %v1241
        %1370 = vst [vmem:[%s249 + $0xd8] sm:$0xf] %v1242
        %1371 = vst [vmem:[%s249 + $0xdc] sm:$0xf] %v1243
        %1372 = vst [vmem:[%s249 + $0xe0] sm:$0xf] %v1244
        %1373 = vst [vmem:[%s249 + $0xe4] sm:$0xf] %v1245
        %1374 = vst [vmem:[%s249 + $0xe8] sm:$0xf] %v1246
        %1375 = vst [vmem:[%s249 + $0xec] sm:$0xf] %v1247
        %1376 = vst [vmem:[%s249 + $0xf0] sm:$0xf] %v1248
        %1377 = vst [vmem:[%s249 + $0xf4] sm:$0xf] %v1249
        %1378 = vst [vmem:[%s249 + $0xf8] sm:$0xf] %v1250
        %1379 = vst [vmem:[%s249 + $0xfc] sm:$0xf] %v1251
        %s1380 = smul.u32 64, %s22
        %p1381 = scmp.lt.s32.totalorder %s1380, 2047
        %s1382 = scalar_select %p1381, %s1380, 2047
        %p1383 = scmp.lt.s32.totalorder %s23, 0
        %s1384 = scalar_select %p1383, %s23, 0
        %s1385 = sadd.s32 %s1384, %s1382
        %s1386 = smul.addr %s1385, 4
        %s1387 = scalar_lea.vmem %s3, %s1386
        // Predicated region
        $region41: #{tpu_custom_call.1} parent=31 // pred_check
          %p1388 = pneg %p128
        $region42: #{tpu_custom_call.1} parent=31 // pred_check_branch
          %1390 = sbr.rel (%p1388) target = $region44
        $region43: #{tpu_custom_call.1} parent=31 // pred_region
          %s1391 = smul.u32 64, %s22
        $region44: #{tpu_custom_call.1} parent=31 // pred_fallthru
          _
      $region32: #{tpu_custom_call.1} parent=5 // pred_fallthru
        _
      %p1392 = scmp.le.s32.totalorder 2, %s13
      // Predicated region
      $region45: #{tpu_custom_call.1} parent=5 // pred_check
        %p1393 = pneg %p1392
      $region46: #{tpu_custom_call.1} parent=5 // pred_check_branch
        %1395 = sbr.rel (%p1393) target = $region48
      $region47: #{tpu_custom_call.1} parent=5 // pred_region
        %s1396 = ssub.s32 %s13, 2
        // Predicated region
        $region49: #{tpu_custom_call.1} parent=47 // pred_check
          %p1397 = pneg %p134
        $region50: #{tpu_custom_call.1} parent=47 // pred_check_branch
          %1399 = sbr.rel (%p1397) target = $region52
        $region51: #{tpu_custom_call.1} parent=47 // pred_region
          %s1400 = smul.u32 64, %s24
          %p1401 = scmp.lt.s32.totalorder %s1400, 2047
          %s1402 = scalar_select %p1401, %s1400, 2047
          %p1403 = scmp.lt.s32.totalorder %s25, 0
          %s1404 = scalar_select %p1403, %s25, 0
          %s1405 = sadd.s32 %s1404, %s1402
          %s1406 = smul.addr %s1405, 4
          %s1407 = scalar_lea.vmem %s3, %s1406
        $region52: #{tpu_custom_call.1} parent=47 // pred_fallthru
          _
      $region48: #{tpu_custom_call.1} parent=5 // pred_fallthru
        _
    $region6: #{tpu_custom_call.1} parent=1 // loop_footer
      %s17 = sadd.s32 1, %s13
    $region7: #{tpu_custom_call.1} parent=1 // loop_footer_branch
      %12 = sbr.rel target = $region3
    $region8: #{tpu_custom_call.1} parent=1 // loop_exit
      _
    %1408 = vsyncpa [#allocation3], 1
    %s1409 = scalar_lea.sflag [#allocation3], 1
    %1410 = vsyncpa %s1409, 1
    %1411 = vsyncpa [#allocation5], 1

</llo_original>
